<compile_context>
chip_gen: v7x
topology: tpu7x:2x2x1
jax: 0.10.0
libtpu: 0.0.40
codegen_flags: <defaults>
</compile_context>

<pallas_src>
import functools

import jax
import jax.numpy as jnp
import numpy as np
from jax.experimental import pallas as pl
from jax.experimental.pallas import tpu as pltpu

HIDDEN = 512  # hard-coded by the PyTorch module


# ---------------------------------------------------------------------------
# Kernels
# ---------------------------------------------------------------------------
def _rnd_sm_core(x_ref, w1_ref, b1_ref, w2f_ref, b2f_ref, wp_ref, bp_ref,
                 w2t_ref, b2t_ref):
    """Shared compute. Returns (predict, target) f32 tiles of shape (block_b, 512)."""
    x = x_ref[...]  # already bf16 (cast in the wrapper)

    # Fused first layer: one (block_b, D) @ (D, 1024) GEMM = [feature L1 | target L1].
    h = jnp.dot(x, w1_ref[...], preferred_element_type=jnp.float32) + b1_ref[...]
    # Single ReLU + cast over the full (block_b, 1024) tensor, then lane-slice the
    # bf16 result at the 512 (=4*128) boundary -> one pass of VMEM ld/st instead of
    # slicing f32 twice and casting each half.
    h_bf = jnp.maximum(h, 0.0).astype(jnp.bfloat16)
    h_f = h_bf[:, :HIDDEN]   # feature-branch hidden
    h_t = h_bf[:, HIDDEN:]   # target-branch hidden

    # feature L2
    f = jnp.dot(h_f, w2f_ref[...], preferred_element_type=jnp.float32) + b2f_ref[...]
    # predictor: ReLU -> Linear
    p = jnp.dot(jnp.maximum(f, 0.0).astype(jnp.bfloat16), wp_ref[...],
                preferred_element_type=jnp.float32) + bp_ref[...]
    # target L2
    t = jnp.dot(h_t, w2t_ref[...], preferred_element_type=jnp.float32) + b2t_ref[...]
    return p, t


def _forward_kernel(x_ref, w1_ref, b1_ref, w2f_ref, b2f_ref, wp_ref, bp_ref,
                    w2t_ref, b2t_ref, p_ref, t_ref):
    p, t = _rnd_sm_core(x_ref, w1_ref, b1_ref, w2f_ref, b2f_ref, wp_ref, bp_ref,
                        w2t_ref, b2t_ref)
    # Two separate lane-dense (block_b, 512) unmasked store streams.
    p_ref[...] = p.astype(p_ref.dtype)
    t_ref[...] = t.astype(t_ref.dtype)


def _novelty_kernel(x_ref, w1_ref, b1_ref, w2f_ref, b2f_ref, wp_ref, bp_ref,
                    w2t_ref, b2t_ref, nov_ref):
    p, t = _rnd_sm_core(x_ref, w1_ref, b1_ref, w2f_ref, b2f_ref, wp_ref, bp_ref,
                        w2t_ref, b2t_ref)
    d = p - t
    nov_ref[...] = jnp.sum(d * d, axis=-1, keepdims=True)


# ---------------------------------------------------------------------------
# Tiling / VMEM sizing helpers
# ---------------------------------------------------------------------------
def _pick_block_b(B):
    """Largest batch tile (multiple of 8, <= 256) that divides B and yields >= 2
    grid steps; fall back to the whole batch for small / awkward B."""
    if B <= 128:
        return B
    for cand in range(min(256, B // 2), 7, -1):
        if B % cand == 0 and cand % 8 == 0:
            return cand
    return B


def _vmem_limit_bytes(D, block_b, out_dtype):
    out_bytes = jnp.dtype(out_dtype).itemsize
    w = 2 * (D * 2 * HIDDEN + 3 * HIDDEN * HIDDEN)       # bf16 weights (resident)
    b = 4 * (2 * HIDDEN + 3 * HIDDEN)                    # f32 biases (resident)
    x_tile = 2 * block_b * D                             # bf16 input tile
    out_tiles = 2 * block_b * HIDDEN * out_bytes         # two output tiles
    interm = 4 * block_b * 5 * HIDDEN                    # f32 h/f/p/t working set
    need = w + b + 2 * (x_tile + out_tiles) + interm     # x/out double-buffered
    return int(min(max(2 * need, 16 << 20), 48 << 20))   # headroom, capped for v7x


# ---------------------------------------------------------------------------
# Wrapper
# ---------------------------------------------------------------------------
@functools.partial(jax.jit, static_argnames=("block_b", "out_dtype", "fuse_novelty"))
def rnd_sm_forward(x, params, block_b=None, out_dtype=jnp.bfloat16,
                   fuse_novelty=False):
    """Forward pass of RND_SM_Model (MLP branch).

    Returns (predict_feature, target_feature), each (B, 512) in `out_dtype`
    (bf16 default; pass out_dtype=jnp.float32 for full-precision outputs).
    With fuse_novelty=True, returns sum((predict - target)**2, -1) of shape
    (B, 1) float32 instead, without materializing the feature tensors.
    """
    B, D = x.shape
    if block_b is None:
        block_b = _pick_block_b(B)
    assert B % block_b == 0, "batch must be a multiple of block_b (pad the batch)"
    grid = (B // block_b,)

    (w1, b1, w2f, b2f, wp, bp, w2t, b2t) = params
    x = x.astype(jnp.bfloat16)  # halve x HBM read + x VMEM double-buffer footprint

    # Grid-invariant operands: whole-array VMEM placement (resident, not pipelined,
    # so no pointless double-buffering of multi-MiB weights).
    vmem_full = pl.BlockSpec(memory_space=pltpu.MemorySpace.VMEM)
    in_specs = [pl.BlockSpec((block_b, D), lambda i: (i, 0))] + [vmem_full] * 8

    if fuse_novelty:
        kernel = _novelty_kernel
        out_specs = pl.BlockSpec((block_b, 1), lambda i: (i, 0))
        out_shape = jax.ShapeDtypeStruct((B, 1), jnp.float32)
    else:
        kernel = _forward_kernel
        out_specs = (pl.BlockSpec((block_b, HIDDEN), lambda i: (i, 0)),
                     pl.BlockSpec((block_b, HIDDEN), lambda i: (i, 0)))
        out_shape = (jax.ShapeDtypeStruct((B, HIDDEN), out_dtype),
                     jax.ShapeDtypeStruct((B, HIDDEN), out_dtype))

    return pl.pallas_call(
        kernel,
        grid=grid,
        in_specs=in_specs,
        out_specs=out_specs,
        out_shape=out_shape,
        compiler_params=pltpu.CompilerParams(
            dimension_semantics=("parallel",),
            vmem_limit_bytes=_vmem_limit_bytes(D, block_b, out_dtype),
        ),
    )(x, w1, b1, w2f, b2f, wp, bp, w2t, b2t)


# ---------------------------------------------------------------------------
# Params / reference
# ---------------------------------------------------------------------------
def init_params(key, input_dim):
    """Orthogonal(gain=sqrt(2)) weights, zero biases (as the module's init loop does).

    Weights are stored transposed to (in, out) and cast to bf16 (MXU-native);
    biases stay f32.  The two first-layer weights are fused into (D, 1024).
    """
    ortho = jax.nn.initializers.orthogonal(scale=float(np.sqrt(2.0)))
    ks = jax.random.split(key, 5)

    def lin_w(k, d_in, d_out):
        # PyTorch Linear weight is (out, in); store the transpose (in, out).
        return ortho(k, (d_out, d_in), jnp.float32).T.astype(jnp.bfloat16)

    w1f = lin_w(ks[0], input_dim, HIDDEN)      # feature Linear(D, 512)
    w2f = lin_w(ks[1], HIDDEN, HIDDEN)         # feature Linear(512, 512)
    wp = lin_w(ks[2], HIDDEN, HIDDEN)          # predictor Linear(512, 512)
    w1t = lin_w(ks[3], input_dim, HIDDEN)      # target Linear(D, 512)
    w2t = lin_w(ks[4], HIDDEN, HIDDEN)         # target Linear(512, 512)

    w1 = jnp.concatenate([w1f, w1t], axis=1)   # (D, 1024) fused first layer
    b1 = jnp.zeros((1, 2 * HIDDEN), jnp.float32)
    b2f = jnp.zeros((1, HIDDEN), jnp.float32)
    bp = jnp.zeros((1, HIDDEN), jnp.float32)
    b2t = jnp.zeros((1, HIDDEN), jnp.float32)
    return (w1, b1, w2f, b2f, wp, bp, w2t, b2t)


def reference_forward(x, params):
    """Pure-JAX reference with the same bf16-in / f32-accumulate numerics.
    Note: bf16 weights/activations are not bit-equivalent to the f32 PyTorch model."""
    (w1, b1, w2f, b2f, wp, bp, w2t, b2t) = params
    xb = x.astype(jnp.bfloat16)
    h = jnp.maximum(jnp.dot(xb, w1, preferred_element_type=jnp.float32) + b1, 0.0)
    h_bf = h.astype(jnp.bfloat16)
    h_f, h_t = h_bf[:, :HIDDEN], h_bf[:, HIDDEN:]
    f = jnp.dot(h_f, w2f, preferred_element_type=jnp.float32) + b2f
    p = jnp.dot(jnp.maximum(f, 0.0).astype(jnp.bfloat16), wp,
                preferred_element_type=jnp.float32) + bp
    t = jnp.dot(h_t, w2t, preferred_element_type=jnp.float32) + b2t
    return p, t


# ---------------------------------------------------------------------------
if __name__ == "__main__":
    key = jax.random.PRNGKey(0)
    k_x, k_p = jax.random.split(key)

    B, D = 16, 32          # small shapes: batch=16, input_size=(32,)
    x = jax.random.normal(k_x, (B, D), jnp.float32)
    params = init_params(k_p, D)

    # Default path: two bf16 feature outputs.
    pred, targ = rnd_sm_forward(x, params)
    jax.block_until_ready((pred, targ))
    assert pred.shape == (B, HIDDEN) and targ.shape == (B, HIDDEN)

    pred_ref, targ_ref = reference_forward(x, params)
    np.testing.assert_allclose(np.asarray(pred, dtype=np.float32),
                               np.asarray(pred_ref), rtol=2e-2, atol=2e-2)
    np.testing.assert_allclose(np.asarray(targ, dtype=np.float32),
                               np.asarray(targ_ref), rtol=2e-2, atol=2e-2)

    # f32-output path (full-precision writeback).
    pred32, targ32 = rnd_sm_forward(x, params, out_dtype=jnp.float32)
    jax.block_until_ready((pred32, targ32))
    np.testing.assert_allclose(np.asarray(pred32), np.asarray(pred_ref),
                               rtol=2e-2, atol=2e-2)

    # Fused intrinsic-reward reduction path.
    nov = rnd_sm_forward(x, params, fuse_novelty=True)
    jax.block_until_ready(nov)
    nov_ref = jnp.sum((pred_ref - targ_ref) ** 2, axis=-1, keepdims=True)
    assert nov.shape == (B, 1)
    np.testing.assert_allclose(np.asarray(nov), np.asarray(nov_ref),
                               rtol=2e-2, atol=2e-2)

    print("KERNEL_OK")
</pallas_src>

<mosaic_0001>
module attributes {stable_mosaic.version = 11 : i64} {
  func.func @_forward_kernel(%arg0: i32, %arg1: memref<16x32xbf16, #tpu.memory_space<vmem>>, %arg2: memref<32x1024xbf16, #tpu.memory_space<vmem>>, %arg3: memref<1x1024xf32, #tpu.memory_space<vmem>>, %arg4: memref<512x512xbf16, #tpu.memory_space<vmem>>, %arg5: memref<1x512xf32, #tpu.memory_space<vmem>>, %arg6: memref<512x512xbf16, #tpu.memory_space<vmem>>, %arg7: memref<1x512xf32, #tpu.memory_space<vmem>>, %arg8: memref<512x512xbf16, #tpu.memory_space<vmem>>, %arg9: memref<1x512xf32, #tpu.memory_space<vmem>>, %arg10: memref<16x512xbf16, #tpu.memory_space<vmem>>, %arg11: memref<16x512xbf16, #tpu.memory_space<vmem>>) attributes {dimension_semantics = [#tpu.dimension_semantics<parallel>], iteration_bounds = array<i64: 1>, scalar_prefetch = 0 : i64, scratch_operands = 0 : i64, tpu.core_type = #tpu.core_type<tc>, window_params = [{transform_indices = @transform_0, window_bounds = array<i64: 16, 32>}, {pipeline_mode = #tpu.pipeline_mode<synchronous>, transform_indices = @transform_1, window_bounds = array<i64: 32, 1024>}, {pipeline_mode = #tpu.pipeline_mode<synchronous>, transform_indices = @transform_2, window_bounds = array<i64: 1, 1024>}, {pipeline_mode = #tpu.pipeline_mode<synchronous>, transform_indices = @transform_3, window_bounds = array<i64: 512, 512>}, {pipeline_mode = #tpu.pipeline_mode<synchronous>, transform_indices = @transform_4, window_bounds = array<i64: 1, 512>}, {pipeline_mode = #tpu.pipeline_mode<synchronous>, transform_indices = @transform_5, window_bounds = array<i64: 512, 512>}, {pipeline_mode = #tpu.pipeline_mode<synchronous>, transform_indices = @transform_6, window_bounds = array<i64: 1, 512>}, {pipeline_mode = #tpu.pipeline_mode<synchronous>, transform_indices = @transform_7, window_bounds = array<i64: 512, 512>}, {pipeline_mode = #tpu.pipeline_mode<synchronous>, transform_indices = @transform_8, window_bounds = array<i64: 1, 512>}, {transform_indices = @transform_9, window_bounds = array<i64: 16, 512>}, {transform_indices = @transform_10, window_bounds = array<i64: 16, 512>}]} {
    %c0 = arith.constant 0 : index
    %c0_0 = arith.constant 0 : index
    %0 = vector.load %arg1[%c0, %c0_0] : memref<16x32xbf16, #tpu.memory_space<vmem>>, vector<16x32xbf16>
    %c0_1 = arith.constant 0 : index
    %c0_2 = arith.constant 0 : index
    %1 = vector.load %arg2[%c0_1, %c0_2] : memref<32x1024xbf16, #tpu.memory_space<vmem>>, vector<32x1024xbf16>
    %cst = arith.constant dense<0.000000e+00> : vector<16x1024xf32>
    %2 = tpu.matmul %0, %1, %cst {dimension_numbers = #tpu.dot_dimension_numbers<[1], [0], [0], [1], [0, 0, 1, 1], [], []>} : vector<16x32xbf16>, vector<32x1024xbf16>, vector<16x1024xf32> -> vector<16x1024xf32>
    %c0_3 = arith.constant 0 : index
    %c0_4 = arith.constant 0 : index
    %3 = vector.load %arg3[%c0_3, %c0_4] : memref<1x1024xf32, #tpu.memory_space<vmem>>, vector<1x1024xf32>
    %4 = vector.broadcast %3 : vector<1x1024xf32> to vector<16x1024xf32>
    %5 = arith.addf %2, %4 : vector<16x1024xf32>
    %cst_5 = arith.constant 0.000000e+00 : f32
    %6 = vector.broadcast %cst_5 : f32 to vector<16x1024xf32>
    %7 = arith.maximumf %5, %6 : vector<16x1024xf32>
    %8 = arith.truncf %7 : vector<16x1024xf32> to vector<16x1024xbf16>
    %9 = vector.extract_strided_slice %8 {offsets = [0, 0], sizes = [16, 512], strides = [1, 1]} : vector<16x1024xbf16> to vector<16x512xbf16>
    %10 = vector.extract_strided_slice %8 {offsets = [0, 512], sizes = [16, 512], strides = [1, 1]} : vector<16x1024xbf16> to vector<16x512xbf16>
    %c0_6 = arith.constant 0 : index
    %c0_7 = arith.constant 0 : index
    %11 = vector.load %arg4[%c0_6, %c0_7] : memref<512x512xbf16, #tpu.memory_space<vmem>>, vector<512x512xbf16>
    %cst_8 = arith.constant dense<0.000000e+00> : vector<16x512xf32>
    %12 = tpu.matmul %9, %11, %cst_8 {dimension_numbers = #tpu.dot_dimension_numbers<[1], [0], [0], [1], [0, 0, 1, 1], [], []>} : vector<16x512xbf16>, vector<512x512xbf16>, vector<16x512xf32> -> vector<16x512xf32>
    %c0_9 = arith.constant 0 : index
    %c0_10 = arith.constant 0 : index
    %13 = vector.load %arg5[%c0_9, %c0_10] : memref<1x512xf32, #tpu.memory_space<vmem>>, vector<1x512xf32>
    %14 = vector.broadcast %13 : vector<1x512xf32> to vector<16x512xf32>
    %15 = arith.addf %12, %14 : vector<16x512xf32>
    %cst_11 = arith.constant 0.000000e+00 : f32
    %16 = vector.broadcast %cst_11 : f32 to vector<16x512xf32>
    %17 = arith.maximumf %15, %16 : vector<16x512xf32>
    %18 = arith.truncf %17 : vector<16x512xf32> to vector<16x512xbf16>
    %c0_12 = arith.constant 0 : index
    %c0_13 = arith.constant 0 : index
    %19 = vector.load %arg6[%c0_12, %c0_13] : memref<512x512xbf16, #tpu.memory_space<vmem>>, vector<512x512xbf16>
    %cst_14 = arith.constant dense<0.000000e+00> : vector<16x512xf32>
    %20 = tpu.matmul %18, %19, %cst_14 {dimension_numbers = #tpu.dot_dimension_numbers<[1], [0], [0], [1], [0, 0, 1, 1], [], []>} : vector<16x512xbf16>, vector<512x512xbf16>, vector<16x512xf32> -> vector<16x512xf32>
    %c0_15 = arith.constant 0 : index
    %c0_16 = arith.constant 0 : index
    %21 = vector.load %arg7[%c0_15, %c0_16] : memref<1x512xf32, #tpu.memory_space<vmem>>, vector<1x512xf32>
    %22 = vector.broadcast %21 : vector<1x512xf32> to vector<16x512xf32>
    %23 = arith.addf %20, %22 : vector<16x512xf32>
    %c0_17 = arith.constant 0 : index
    %c0_18 = arith.constant 0 : index
    %24 = vector.load %arg8[%c0_17, %c0_18] : memref<512x512xbf16, #tpu.memory_space<vmem>>, vector<512x512xbf16>
    %cst_19 = arith.constant dense<0.000000e+00> : vector<16x512xf32>
    %25 = tpu.matmul %10, %24, %cst_19 {dimension_numbers = #tpu.dot_dimension_numbers<[1], [0], [0], [1], [0, 0, 1, 1], [], []>} : vector<16x512xbf16>, vector<512x512xbf16>, vector<16x512xf32> -> vector<16x512xf32>
    %c0_20 = arith.constant 0 : index
    %c0_21 = arith.constant 0 : index
    %26 = vector.load %arg9[%c0_20, %c0_21] : memref<1x512xf32, #tpu.memory_space<vmem>>, vector<1x512xf32>
    %27 = vector.broadcast %26 : vector<1x512xf32> to vector<16x512xf32>
    %28 = arith.addf %25, %27 : vector<16x512xf32>
    %29 = arith.truncf %23 : vector<16x512xf32> to vector<16x512xbf16>
    %c0_22 = arith.constant 0 : index
    %c0_23 = arith.constant 0 : index
    %30 = vector.load %arg10[%c0_22, %c0_23] : memref<16x512xbf16, #tpu.memory_space<vmem>>, vector<16x512xbf16>
    tpu.vector_store %arg10[%c0_22, %c0_23], %29 {strides = array<i32>} : memref<16x512xbf16, #tpu.memory_space<vmem>>, vector<16x512xbf16>,
    %31 = arith.truncf %28 : vector<16x512xf32> to vector<16x512xbf16>
    %c0_24 = arith.constant 0 : index
    %c0_25 = arith.constant 0 : index
    %32 = vector.load %arg11[%c0_24, %c0_25] : memref<16x512xbf16, #tpu.memory_space<vmem>>, vector<16x512xbf16>
    tpu.vector_store %arg11[%c0_24, %c0_25], %31 {strides = array<i32>} : memref<16x512xbf16, #tpu.memory_space<vmem>>, vector<16x512xbf16>,
    return
  }
  func.func @transform_0(%arg0: i32) -> (i32, i32) {
    %c0_i32 = arith.constant 0 : i32
    %c0_i32_0 = arith.constant 0 : i32
    return %arg0, %c0_i32 : i32, i32
  }
  func.func @transform_1(%arg0: i32) -> (i32, i32) {
    %c0_i32 = arith.constant 0 : i32
    %c0_i32_0 = arith.constant 0 : i32
    %c0_i32_1 = arith.constant 0 : i32
    return %c0_i32, %c0_i32_0 : i32, i32
  }
  func.func @transform_2(%arg0: i32) -> (i32, i32) {
    %c0_i32 = arith.constant 0 : i32
    %c0_i32_0 = arith.constant 0 : i32
    %c0_i32_1 = arith.constant 0 : i32
    return %c0_i32, %c0_i32_0 : i32, i32
  }
  func.func @transform_3(%arg0: i32) -> (i32, i32) {
    %c0_i32 = arith.constant 0 : i32
    %c0_i32_0 = arith.constant 0 : i32
    %c0_i32_1 = arith.constant 0 : i32
    return %c0_i32, %c0_i32_0 : i32, i32
  }
  func.func @transform_4(%arg0: i32) -> (i32, i32) {
    %c0_i32 = arith.constant 0 : i32
    %c0_i32_0 = arith.constant 0 : i32
    %c0_i32_1 = arith.constant 0 : i32
    return %c0_i32, %c0_i32_0 : i32, i32
  }
  func.func @transform_5(%arg0: i32) -> (i32, i32) {
    %c0_i32 = arith.constant 0 : i32
    %c0_i32_0 = arith.constant 0 : i32
    %c0_i32_1 = arith.constant 0 : i32
    return %c0_i32, %c0_i32_0 : i32, i32
  }
  func.func @transform_6(%arg0: i32) -> (i32, i32) {
    %c0_i32 = arith.constant 0 : i32
    %c0_i32_0 = arith.constant 0 : i32
    %c0_i32_1 = arith.constant 0 : i32
    return %c0_i32, %c0_i32_0 : i32, i32
  }
  func.func @transform_7(%arg0: i32) -> (i32, i32) {
    %c0_i32 = arith.constant 0 : i32
    %c0_i32_0 = arith.constant 0 : i32
    %c0_i32_1 = arith.constant 0 : i32
    return %c0_i32, %c0_i32_0 : i32, i32
  }
  func.func @transform_8(%arg0: i32) -> (i32, i32) {
    %c0_i32 = arith.constant 0 : i32
    %c0_i32_0 = arith.constant 0 : i32
    %c0_i32_1 = arith.constant 0 : i32
    return %c0_i32, %c0_i32_0 : i32, i32
  }
  func.func @transform_9(%arg0: i32) -> (i32, i32) {
    %c0_i32 = arith.constant 0 : i32
    %c0_i32_0 = arith.constant 0 : i32
    return %arg0, %c0_i32 : i32, i32
  }
  func.func @transform_10(%arg0: i32) -> (i32, i32) {
    %c0_i32 = arith.constant 0 : i32
    %c0_i32_0 = arith.constant 0 : i32
    return %arg0, %c0_i32 : i32, i32
  }
}

</mosaic_0001>

<llo_original>
// kernel: rnd_sm_forward.1
$region0: #{rnd_sm_forward.1}
  #allocation0 [shape = 'u32[]', space=smem, size = 0x4, offset = 0x4, fixed_abs, tag = 'smem constant byte address 0x4 - core index']
  #allocation1 [shape = 'u32[144,128]{1,0:T(1,128)}', space=vmem, size = 0x12000, scoped, tag = 'internal scratch']
  %s0 = inlined_call_operand.vmem [shape: bf16[16,32], index: 0, kind: input, shape index: {}]
  %s1 = inlined_call_operand.hbm [shape: bf16[32,1024], index: 1, kind: input, shape index: {}]
  %s2 = inlined_call_operand.vmem [shape: f32[1,1024], index: 2, kind: input, shape index: {}]
  %s3 = inlined_call_operand.hbm [shape: bf16[512,512], index: 3, kind: input, shape index: {}]
  %s4 = inlined_call_operand.vmem [shape: f32[1,512], index: 4, kind: input, shape index: {}]
  %s5 = inlined_call_operand.hbm [shape: bf16[512,512], index: 5, kind: input, shape index: {}]
  %s6 = inlined_call_operand.vmem [shape: f32[1,512], index: 6, kind: input, shape index: {}]
  %s7 = inlined_call_operand.hbm [shape: bf16[512,512], index: 7, kind: input, shape index: {}]
  %s8 = inlined_call_operand.vmem [shape: f32[1,512], index: 8, kind: input, shape index: {}]
  %s9 = inlined_call_operand.hbm [shape: bf16[16,512], index: 9, kind: output, shape index: {0}]
  %s10 = inlined_call_operand.hbm [shape: bf16[16,512], index: 10, kind: output, shape index: {1}]
  %11 = xla_tuple %s9, %s10
  %s12 = sld [smem:[#allocation0]]
  $region70: #{rnd_sm_forward.1} parent=0
    _
  %s14 = ssub.s32 1, %s12
  %s15 = scalar_select 0, %s14, %s12
  $region1: #{rnd_sm_forward.1} parent=0
    #allocation2 [shape = 'u8[65536]{0}', space=vmem, size = 0x10000, scoped, tag = 'input window, operand 1, single buffered']
    #allocation3 [shape = 's32[1]{0}', space=sflag, size = 0x4, scoped, tag = 'scoped memory for rnd_sm_forward.1']
    #allocation4 [shape = 's32[1]{0}', space=sflag, size = 0x4, scoped, tag = 'scoped memory for rnd_sm_forward.1']
    #allocation5 [shape = 'u8[524288]{0}', space=vmem, size = 0x80000, scoped, tag = 'input window, operand 3, single buffered']
    #allocation6 [shape = 's32[1]{0}', space=sflag, size = 0x4, scoped, tag = 'scoped memory for rnd_sm_forward.1']
    #allocation7 [shape = 'u8[524288]{0}', space=vmem, size = 0x80000, scoped, tag = 'input window, operand 5, single buffered']
    #allocation8 [shape = 'u8[524288]{0}', space=vmem, size = 0x80000, scoped, tag = 'input window, operand 7, single buffered']
    #allocation9 [shape = 's32[1]{0}', space=sflag, size = 0x4, scoped, tag = 'scoped memory for rnd_sm_forward.1']
    #allocation10 [shape = 'u8[16384]{0}', space=vmem, size = 0x4000, scoped, tag = 'output window, operand 0, single buffered']
    #allocation11 [shape = 'u8[16384]{0}', space=vmem, size = 0x4000, scoped, tag = 'output window, operand 1, single buffered']
    #allocation12 [shape = 's32[1]{0}', space=sflag, size = 0x4, scoped, tag = 'scoped memory for rnd_sm_forward.1']
    %16 = vsyncpa [#allocation3], 0
    %17 = vsyncpa [#allocation6], 0
    %18 = vsyncpa [#allocation9], 0
    %19 = vsyncpa [#allocation4], 0
    %20 = vsyncpa [#allocation12], 0
    // Predicated region
    $region2: #{rnd_sm_forward.1} parent=1 // pred_check
      _
    $region3: #{rnd_sm_forward.1} parent=1 // pred_check_branch
      %22 = sbr.rel (0) target = $region5
    $region4: #{rnd_sm_forward.1} parent=1 // pred_region
      _
    $region5: #{rnd_sm_forward.1} parent=1 // pred_fallthru
      _
    // Predicated region
    $region6: #{rnd_sm_forward.1} parent=1 // pred_check
      _
    $region7: #{rnd_sm_forward.1} parent=1 // pred_check_branch
      %24 = sbr.rel (0) target = $region9
    $region8: #{rnd_sm_forward.1} parent=1 // pred_region
      %s26 = ssub.s32 2048, 2048
      %27 = vsyncadd [#allocation3], %s26
      %s28 = sshll.u32 [#allocation2], 4
      %s29 = int_to_ptr.vmem [resolvable:$true] %s28
      %34 = dma.hbm_to_vmem [thread:$0]  %s1, 2048, %s29, [#allocation3], 512, 512, 32
    $region9: #{rnd_sm_forward.1} parent=1 // pred_fallthru
      _
    // Predicated region
    $region10: #{rnd_sm_forward.1} parent=1 // pred_check
      _
    $region11: #{rnd_sm_forward.1} parent=1 // pred_check_branch
      %36 = sbr.rel (0) target = $region13
    $region12: #{rnd_sm_forward.1} parent=1 // pred_region
      _
    $region13: #{rnd_sm_forward.1} parent=1 // pred_fallthru
      _
    // Predicated region
    $region14: #{rnd_sm_forward.1} parent=1 // pred_check
      _
    $region15: #{rnd_sm_forward.1} parent=1 // pred_check_branch
      %38 = sbr.rel (0) target = $region17
    $region16: #{rnd_sm_forward.1} parent=1 // pred_region
      %s40 = ssub.s32 16384, 16384
      %41 = vsyncadd [#allocation6], %s40
      %s42 = sshll.u32 [#allocation5], 4
      %s43 = int_to_ptr.vmem [resolvable:$true] %s42
      %48 = dma.hbm_to_vmem [thread:$0]  %s3, 16384, %s43, [#allocation6], 256, 256, 16
    $region17: #{rnd_sm_forward.1} parent=1 // pred_fallthru
      _
    // Predicated region
    $region18: #{rnd_sm_forward.1} parent=1 // pred_check
      _
    $region19: #{rnd_sm_forward.1} parent=1 // pred_check_branch
      %50 = sbr.rel (0) target = $region21
    $region20: #{rnd_sm_forward.1} parent=1 // pred_region
      _
    $region21: #{rnd_sm_forward.1} parent=1 // pred_fallthru
      _
    // Predicated region
    $region22: #{rnd_sm_forward.1} parent=1 // pred_check
      _
    $region23: #{rnd_sm_forward.1} parent=1 // pred_check_branch
      %52 = sbr.rel (0) target = $region25
    $region24: #{rnd_sm_forward.1} parent=1 // pred_region
      %s54 = ssub.s32 16384, 16384
      %55 = vsyncadd [#allocation6], %s54
      %s56 = sshll.u32 [#allocation7], 4
      %s57 = int_to_ptr.vmem [resolvable:$true] %s56
      %62 = dma.hbm_to_vmem [thread:$0]  %s5, 16384, %s57, [#allocation6], 256, 256, 16
    $region25: #{rnd_sm_forward.1} parent=1 // pred_fallthru
      _
    // Predicated region
    $region26: #{rnd_sm_forward.1} parent=1 // pred_check
      _
    $region27: #{rnd_sm_forward.1} parent=1 // pred_check_branch
      %64 = sbr.rel (0) target = $region29
    $region28: #{rnd_sm_forward.1} parent=1 // pred_region
      _
    $region29: #{rnd_sm_forward.1} parent=1 // pred_fallthru
      _
    // Predicated region
    $region30: #{rnd_sm_forward.1} parent=1 // pred_check
      _
    $region31: #{rnd_sm_forward.1} parent=1 // pred_check_branch
      %66 = sbr.rel (0) target = $region33
    $region32: #{rnd_sm_forward.1} parent=1 // pred_region
      %s68 = ssub.s32 16384, 16384
      %69 = vsyncadd [#allocation9], %s68
      %s70 = sshll.u32 [#allocation8], 4
      %s71 = int_to_ptr.vmem [resolvable:$true] %s70
      %76 = dma.hbm_to_vmem [thread:$0]  %s7, 16384, %s71, [#allocation9], 256, 256, 16
    $region33: #{rnd_sm_forward.1} parent=1 // pred_fallthru
      _
    // Predicated region
    $region34: #{rnd_sm_forward.1} parent=1 // pred_check
      _
    $region35: #{rnd_sm_forward.1} parent=1 // pred_check_branch
      %78 = sbr.rel (0) target = $region37
    $region36: #{rnd_sm_forward.1} parent=1 // pred_region
      _
    $region37: #{rnd_sm_forward.1} parent=1 // pred_fallthru
      _
    // Predicated region
    $region38: #{rnd_sm_forward.1} parent=1 // pred_check
      _
    $region39: #{rnd_sm_forward.1} parent=1 // pred_check_branch
      %80 = sbr.rel (0) target = $region41
    $region40: #{rnd_sm_forward.1} parent=1 // pred_region
      %81 = dma.done [#allocation3], 2048
    $region41: #{rnd_sm_forward.1} parent=1 // pred_fallthru
      _
    // Predicated region
    $region42: #{rnd_sm_forward.1} parent=1 // pred_check
      _
    $region43: #{rnd_sm_forward.1} parent=1 // pred_check_branch
      %83 = sbr.rel (0) target = $region45
    $region44: #{rnd_sm_forward.1} parent=1 // pred_region
      %84 = dma.done [#allocation6], 16384
    $region45: #{rnd_sm_forward.1} parent=1 // pred_fallthru
      _
    // Predicated region
    $region46: #{rnd_sm_forward.1} parent=1 // pred_check
      _
    $region47: #{rnd_sm_forward.1} parent=1 // pred_check_branch
      %86 = sbr.rel (0) target = $region49
    $region48: #{rnd_sm_forward.1} parent=1 // pred_region
      %87 = dma.done [#allocation6], 16384
    $region49: #{rnd_sm_forward.1} parent=1 // pred_fallthru
      _
    // Predicated region
    $region50: #{rnd_sm_forward.1} parent=1 // pred_check
      _
    $region51: #{rnd_sm_forward.1} parent=1 // pred_check_branch
      %89 = sbr.rel (0) target = $region53
    $region52: #{rnd_sm_forward.1} parent=1 // pred_region
      %90 = dma.done [#allocation9], 16384
    $region53: #{rnd_sm_forward.1} parent=1 // pred_fallthru
      _
    %v92 = vld [vmem:[%s0] sm:$0xf]
    %v93 = vld [vmem:[%s0 + $0x4] sm:$0xf]
    %v94 = vld [vmem:[#allocation2] sm:$0xff]
    %v95 = vld [vmem:[#allocation2 + $0x8] sm:$0xff]
    %v96 = vld [vmem:[#allocation2 + $0x10] sm:$0xff]
    %v97 = vld [vmem:[#allocation2 + $0x18] sm:$0xff]
    %v98 = vld [vmem:[#allocation2 + $0x20] sm:$0xff]
    %v99 = vld [vmem:[#allocation2 + $0x28] sm:$0xff]
    %v100 = vld [vmem:[#allocation2 + $0x30] sm:$0xff]
    %v101 = vld [vmem:[#allocation2 + $0x38] sm:$0xff]
    %v102 = vld [vmem:[#allocation2 + $0x40] sm:$0xff]
    %v103 = vld [vmem:[#allocation2 + $0x48] sm:$0xff]
    %v104 = vld [vmem:[#allocation2 + $0x50] sm:$0xff]
    %v105 = vld [vmem:[#allocation2 + $0x58] sm:$0xff]
    %v106 = vld [vmem:[#allocation2 + $0x60] sm:$0xff]
    %v107 = vld [vmem:[#allocation2 + $0x68] sm:$0xff]
    %v108 = vld [vmem:[#allocation2 + $0x70] sm:$0xff]
    %v109 = vld [vmem:[#allocation2 + $0x78] sm:$0xff]
    %v110 = vld [vmem:[%s2] sm:$0xff]
    %v112 = vlaneseq
    %v113 = vshrl.u32 %v112, 7
    %v114 = vsub.s32 0, %v113
    %v115 = vrot.slane %v110, %v114
    %v116 = vlaneseq
    %v117 = vshrl.u32 %v116, 7
    %v118 = vsub.s32 1, %v117
    %v119 = vrot.slane %v110, %v118
    %v120 = vlaneseq
    %v121 = vshrl.u32 %v120, 7
    %v122 = vsub.s32 2, %v121
    %v123 = vrot.slane %v110, %v122
    %v124 = vlaneseq
    %v125 = vshrl.u32 %v124, 7
    %v126 = vsub.s32 3, %v125
    %v127 = vrot.slane %v110, %v126
    %v128 = vlaneseq
    %v129 = vshrl.u32 %v128, 7
    %v130 = vsub.s32 4, %v129
    %v131 = vrot.slane %v110, %v130
    %v132 = vlaneseq
    %v133 = vshrl.u32 %v132, 7
    %v134 = vsub.s32 5, %v133
    %v135 = vrot.slane %v110, %v134
    %v136 = vlaneseq
    %v137 = vshrl.u32 %v136, 7
    %v138 = vsub.s32 6, %v137
    %v139 = vrot.slane %v110, %v138
    %v140 = vlaneseq
    %v141 = vshrl.u32 %v140, 7
    %v142 = vsub.s32 7, %v141
    %v143 = vrot.slane %v110, %v142
    %v154 = vunpack.c.l.b16 %v92
    %v155 = vunpack.c.l.b16 %v93
    %v156 = vpack.c.b16 %v155, %v154
    %v173 = vunpack.c.l.b16 %v94
    %v174 = vunpack.c.h.b16 %v94
    %v175 = vunpack.c.l.b16 %v95
    %v176 = vunpack.c.h.b16 %v95
    %v177 = vunpack.c.l.b16 %v96
    %v178 = vunpack.c.h.b16 %v96
    %v179 = vunpack.c.l.b16 %v97
    %v180 = vunpack.c.h.b16 %v97
    %v181 = vunpack.c.l.b16 %v98
    %v182 = vunpack.c.h.b16 %v98
    %v183 = vunpack.c.l.b16 %v99
    %v184 = vunpack.c.h.b16 %v99
    %v185 = vunpack.c.l.b16 %v100
    %v186 = vunpack.c.h.b16 %v100
    %v187 = vunpack.c.l.b16 %v101
    %v188 = vunpack.c.h.b16 %v101
    %v189 = vunpack.c.l.b16 %v102
    %v190 = vunpack.c.h.b16 %v102
    %v191 = vunpack.c.l.b16 %v103
    %v192 = vunpack.c.h.b16 %v103
    %v193 = vunpack.c.l.b16 %v104
    %v194 = vunpack.c.h.b16 %v104
    %v195 = vunpack.c.l.b16 %v105
    %v196 = vunpack.c.h.b16 %v105
    %v197 = vunpack.c.l.b16 %v106
    %v198 = vunpack.c.h.b16 %v106
    %v199 = vunpack.c.l.b16 %v107
    %v200 = vunpack.c.h.b16 %v107
    %v201 = vunpack.c.l.b16 %v108
    %v202 = vunpack.c.h.b16 %v108
    %v203 = vunpack.c.l.b16 %v109
    %v204 = vunpack.c.h.b16 %v109
    %v205 = vpack.c.b16 %v181, %v173
    %v206 = vpack.c.b16 %v182, %v174
    %v207 = vpack.c.b16 %v183, %v175
    %v208 = vpack.c.b16 %v184, %v176
    %v209 = vpack.c.b16 %v185, %v177
    %v210 = vpack.c.b16 %v186, %v178
    %v211 = vpack.c.b16 %v187, %v179
    %v212 = vpack.c.b16 %v188, %v180
    %v213 = vpack.c.b16 %v197, %v189
    %v214 = vpack.c.b16 %v198, %v190
    %v215 = vpack.c.b16 %v199, %v191
    %v216 = vpack.c.b16 %v200, %v192
    %v217 = vpack.c.b16 %v201, %v193
    %v218 = vpack.c.b16 %v202, %v194
    %v219 = vpack.c.b16 %v203, %v195
    %v220 = vpack.c.b16 %v204, %v196
    %vm237 = vcmask 261120
    %v239 = vsel %vm237, %v156, 0
    %241 = vmatprep.subr.bf16.mxu0 %v206
    %242 = vmatpush1.bf16.msra.mxu0 %v205
    %243 = vmatprep.subr.bf16.mxu0 %v214
    %244 = vmatpush1.bf16.msra.mxu0 %v213
    %245 = vmatprep.subr.bf16.mxu0 0
    %246 = vmatpush1.bf16.msra.mxu0 0
    %247 = vmatprep.subr.bf16.mxu0 0
    %248 = vmatpush1.bf16.msra.mxu0 0
    %249 = vmatprep.subr.bf16.mxu0 0
    %250 = vmatpush1.bf16.msra.mxu0 0
    %251 = vmatprep.subr.bf16.mxu0 0
    %252 = vmatpush1.bf16.msra.mxu0 0
    %253 = vmatprep.subr.bf16.mxu0 0
    %254 = vmatpush1.bf16.msra.mxu0 0
    %255 = vmatprep.subr.bf16.mxu0 0
    %256 = vmatpush1.bf16.msra.mxu0 0
    %257 = vmatprep.subr.bf16.mxu0 0
    %258 = vmatpush1.bf16.msra.mxu0 0
    %259 = vmatprep.subr.bf16.mxu0 0
    %260 = vmatpush1.bf16.msra.mxu0 0
    %261 = vmatprep.subr.bf16.mxu0 0
    %262 = vmatpush1.bf16.msra.mxu0 0
    %263 = vmatprep.subr.bf16.mxu0 0
    %264 = vmatpush1.bf16.msra.mxu0 0
    %265 = vmatprep.subr.bf16.mxu0 0
    %266 = vmatpush1.bf16.msra.mxu0 0
    %267 = vmatprep.subr.bf16.mxu0 0
    %268 = vmatpush1.bf16.msra.mxu0 0
    %269 = vmatprep.subr.bf16.mxu0 0
    %270 = vmatpush1.bf16.msra.mxu0 0
    %271 = vmatprep.subr.bf16.mxu0 0
    %272 = vmatpush1.bf16.msra.mxu0 0
    %273 = vmatprep.mubr.bf16.mxu0 0
    %274 = vmatmul.mubr.bf16.gmra.mrb[0].mxu0 %v239
    %v275 = vpop.f32.mrb[0].mxu0
    %v276 = vadd.f32 %v115, %v275
    %v277 = vpop.f32.mrb[0].mxu0
    %v278 = vadd.f32 %v119, %v277
    %v279 = vpop.f32.mrb[0].mxu0
    %v280 = vadd.f32 %v115, %v279
    %v281 = vpop.f32.mrb[0].mxu0
    %v282 = vadd.f32 %v119, %v281
    %283 = vdwg.mxu0
    %284 = vmatprep.subr.bf16.mxu0 %v208
    %285 = vmatpush1.bf16.msra.mxu0 %v207
    %286 = vmatprep.subr.bf16.mxu0 %v216
    %287 = vmatpush1.bf16.msra.mxu0 %v215
    %288 = vmatprep.subr.bf16.mxu0 0
    %289 = vmatpush1.bf16.msra.mxu0 0
    %290 = vmatprep.subr.bf16.mxu0 0
    %291 = vmatpush1.bf16.msra.mxu0 0
    %292 = vmatprep.subr.bf16.mxu0 0
    %293 = vmatpush1.bf16.msra.mxu0 0
    %294 = vmatprep.subr.bf16.mxu0 0
    %295 = vmatpush1.bf16.msra.mxu0 0
    %296 = vmatprep.subr.bf16.mxu0 0
    %297 = vmatpush1.bf16.msra.mxu0 0
    %298 = vmatprep.subr.bf16.mxu0 0
    %299 = vmatpush1.bf16.msra.mxu0 0
    %300 = vmatprep.subr.bf16.mxu0 0
    %301 = vmatpush1.bf16.msra.mxu0 0
    %302 = vmatprep.subr.bf16.mxu0 0
    %303 = vmatpush1.bf16.msra.mxu0 0
    %304 = vmatprep.subr.bf16.mxu0 0
    %305 = vmatpush1.bf16.msra.mxu0 0
    %306 = vmatprep.subr.bf16.mxu0 0
    %307 = vmatpush1.bf16.msra.mxu0 0
    %308 = vmatprep.subr.bf16.mxu0 0
    %309 = vmatpush1.bf16.msra.mxu0 0
    %310 = vmatprep.subr.bf16.mxu0 0
    %311 = vmatpush1.bf16.msra.mxu0 0
    %312 = vmatprep.subr.bf16.mxu0 0
    %313 = vmatpush1.bf16.msra.mxu0 0
    %314 = vmatprep.subr.bf16.mxu0 0
    %315 = vmatpush1.bf16.msra.mxu0 0
    %316 = vmatprep.mubr.bf16.mxu0 0
    %317 = vmatmul.mubr.bf16.gmra.mrb[0].mxu0 %v239
    %v318 = vpop.f32.mrb[0].mxu0
    %v319 = vadd.f32 %v123, %v318
    %v320 = vpop.f32.mrb[0].mxu0
    %v321 = vadd.f32 %v127, %v320
    %v322 = vpop.f32.mrb[0].mxu0
    %v323 = vadd.f32 %v123, %v322
    %v324 = vpop.f32.mrb[0].mxu0
    %v325 = vadd.f32 %v127, %v324
    %326 = vdwg.mxu0
    %327 = vmatprep.subr.bf16.mxu0 %v210
    %328 = vmatpush1.bf16.msra.mxu0 %v209
    %329 = vmatprep.subr.bf16.mxu0 %v218
    %330 = vmatpush1.bf16.msra.mxu0 %v217
    %331 = vmatprep.subr.bf16.mxu0 0
    %332 = vmatpush1.bf16.msra.mxu0 0
    %333 = vmatprep.subr.bf16.mxu0 0
    %334 = vmatpush1.bf16.msra.mxu0 0
    %335 = vmatprep.subr.bf16.mxu0 0
    %336 = vmatpush1.bf16.msra.mxu0 0
    %337 = vmatprep.subr.bf16.mxu0 0
    %338 = vmatpush1.bf16.msra.mxu0 0
    %339 = vmatprep.subr.bf16.mxu0 0
    %340 = vmatpush1.bf16.msra.mxu0 0
    %341 = vmatprep.subr.bf16.mxu0 0
    %342 = vmatpush1.bf16.msra.mxu0 0
    %343 = vmatprep.subr.bf16.mxu0 0
    %344 = vmatpush1.bf16.msra.mxu0 0
    %345 = vmatprep.subr.bf16.mxu0 0
    %346 = vmatpush1.bf16.msra.mxu0 0
    %347 = vmatprep.subr.bf16.mxu0 0
    %348 = vmatpush1.bf16.msra.mxu0 0
    %349 = vmatprep.subr.bf16.mxu0 0
    %350 = vmatpush1.bf16.msra.mxu0 0
    %351 = vmatprep.subr.bf16.mxu0 0
    %352 = vmatpush1.bf16.msra.mxu0 0
    %353 = vmatprep.subr.bf16.mxu0 0
    %354 = vmatpush1.bf16.msra.mxu0 0
    %355 = vmatprep.subr.bf16.mxu0 0
    %356 = vmatpush1.bf16.msra.mxu0 0
    %357 = vmatprep.subr.bf16.mxu0 0
    %358 = vmatpush1.bf16.msra.mxu0 0
    %359 = vmatprep.mubr.bf16.mxu0 0
    %360 = vmatmul.mubr.bf16.gmra.mrb[0].mxu0 %v239
    %v361 = vpop.f32.mrb[0].mxu0
    %v362 = vadd.f32 %v131, %v361
    %v363 = vpop.f32.mrb[0].mxu0
    %v364 = vadd.f32 %v135, %v363
    %v365 = vpop.f32.mrb[0].mxu0
    %v366 = vadd.f32 %v131, %v365
    %v367 = vpop.f32.mrb[0].mxu0
    %v368 = vadd.f32 %v135, %v367
    %369 = vdwg.mxu0
    %370 = vmatprep.subr.bf16.mxu0 %v212
    %371 = vmatpush1.bf16.msra.mxu0 %v211
    %372 = vmatprep.subr.bf16.mxu0 %v220
    %373 = vmatpush1.bf16.msra.mxu0 %v219
    %374 = vmatprep.subr.bf16.mxu0 0
    %375 = vmatpush1.bf16.msra.mxu0 0
    %376 = vmatprep.subr.bf16.mxu0 0
    %377 = vmatpush1.bf16.msra.mxu0 0
    %378 = vmatprep.subr.bf16.mxu0 0
    %379 = vmatpush1.bf16.msra.mxu0 0
    %380 = vmatprep.subr.bf16.mxu0 0
    %381 = vmatpush1.bf16.msra.mxu0 0
    %382 = vmatprep.subr.bf16.mxu0 0
    %383 = vmatpush1.bf16.msra.mxu0 0
    %384 = vmatprep.subr.bf16.mxu0 0
    %385 = vmatpush1.bf16.msra.mxu0 0
    %386 = vmatprep.subr.bf16.mxu0 0
    %387 = vmatpush1.bf16.msra.mxu0 0
    %388 = vmatprep.subr.bf16.mxu0 0
    %389 = vmatpush1.bf16.msra.mxu0 0
    %390 = vmatprep.subr.bf16.mxu0 0
    %391 = vmatpush1.bf16.msra.mxu0 0
    %392 = vmatprep.subr.bf16.mxu0 0
    %393 = vmatpush1.bf16.msra.mxu0 0
    %394 = vmatprep.subr.bf16.mxu0 0
    %395 = vmatpush1.bf16.msra.mxu0 0
    %396 = vmatprep.subr.bf16.mxu0 0
    %397 = vmatpush1.bf16.msra.mxu0 0
    %398 = vmatprep.subr.bf16.mxu0 0
    %399 = vmatpush1.bf16.msra.mxu0 0
    %400 = vmatprep.subr.bf16.mxu0 0
    %401 = vmatpush1.bf16.msra.mxu0 0
    %402 = vmatprep.mubr.bf16.mxu0 0
    %403 = vmatmul.mubr.bf16.gmra.mrb[0].mxu0 %v239
    %v404 = vpop.f32.mrb[0].mxu0
    %v405 = vadd.f32 %v139, %v404
    %v406 = vpop.f32.mrb[0].mxu0
    %v407 = vadd.f32 %v143, %v406
    %v408 = vpop.f32.mrb[0].mxu0
    %v409 = vadd.f32 %v139, %v408
    %v410 = vpop.f32.mrb[0].mxu0
    %v411 = vadd.f32 %v143, %v410
    %412 = vdwg.mxu0
    %v413 = vmax.f32 %v276, 0.0
    %v414 = vmax.f32 %v278, 0.0
    %v415 = vmax.f32 %v319, 0.0
    %v416 = vmax.f32 %v321, 0.0
    %v417 = vmax.f32 %v362, 0.0
    %v418 = vmax.f32 %v364, 0.0
    %v419 = vmax.f32 %v405, 0.0
    %v420 = vmax.f32 %v407, 0.0
    %v421 = vmax.f32 %v280, 0.0
    %v422 = vmax.f32 %v282, 0.0
    %v423 = vmax.f32 %v323, 0.0
    %v424 = vmax.f32 %v325, 0.0
    %v425 = vmax.f32 %v366, 0.0
    %v426 = vmax.f32 %v368, 0.0
    %v427 = vmax.f32 %v409, 0.0
    %v428 = vmax.f32 %v411, 0.0
    %v429 = vpack.c.bf16 %v421, %v413
    %v430 = vpack.c.bf16 %v422, %v414
    %v431 = vpack.c.bf16 %v423, %v415
    %v432 = vpack.c.bf16 %v424, %v416
    %v433 = vpack.c.bf16 %v425, %v417
    %v434 = vpack.c.bf16 %v426, %v418
    %v435 = vpack.c.bf16 %v427, %v419
    %v436 = vpack.c.bf16 %v428, %v420
    %v437 = vld [vmem:[#allocation5] sm:$0xff]
    %v438 = vld [vmem:[#allocation5 + $0x8] sm:$0xff]
    %v439 = vld [vmem:[#allocation5 + $0x10] sm:$0xff]
    %v440 = vld [vmem:[#allocation5 + $0x18] sm:$0xff]
    %v441 = vld [vmem:[#allocation5 + $0x20] sm:$0xff]
    %v442 = vld [vmem:[#allocation5 + $0x28] sm:$0xff]
    %v443 = vld [vmem:[#allocation5 + $0x30] sm:$0xff]
    %v444 = vld [vmem:[#allocation5 + $0x38] sm:$0xff]
    %v445 = vld [vmem:[#allocation5 + $0x40] sm:$0xff]
    %v446 = vld [vmem:[#allocation5 + $0x48] sm:$0xff]
    %v447 = vld [vmem:[#allocation5 + $0x50] sm:$0xff]
    %v448 = vld [vmem:[#allocation5 + $0x58] sm:$0xff]
    %v449 = vld [vmem:[#allocation5 + $0x60] sm:$0xff]
    %v450 = vld [vmem:[#allocation5 + $0x68] sm:$0xff]
    %v451 = vld [vmem:[#allocation5 + $0x70] sm:$0xff]
    %v452 = vld [vmem:[#allocation5 + $0x78] sm:$0xff]
    %v453 = vld [vmem:[#allocation5 + $0x80] sm:$0xff]
    %v454 = vld [vmem:[#allocation5 + $0x88] sm:$0xff]
    %v455 = vld [vmem:[#allocation5 + $0x90] sm:$0xff]
    %v456 = vld [vmem:[#allocation5 + $0x98] sm:$0xff]
    %v457 = vld [vmem:[#allocation5 + $0xa0] sm:$0xff]
    %v458 = vld [vmem:[#allocation5 + $0xa8] sm:$0xff]
    %v459 = vld [vmem:[#allocation5 + $0xb0] sm:$0xff]
    %v460 = vld [vmem:[#allocation5 + $0xb8] sm:$0xff]
    %v461 = vld [vmem:[#allocation5 + $0xc0] sm:$0xff]
    %v462 = vld [vmem:[#allocation5 + $0xc8] sm:$0xff]
    %v463 = vld [vmem:[#allocation5 + $0xd0] sm:$0xff]
    %v464 = vld [vmem:[#allocation5 + $0xd8] sm:$0xff]
    %v465 = vld [vmem:[#allocation5 + $0xe0] sm:$0xff]
    %v466 = vld [vmem:[#allocation5 + $0xe8] sm:$0xff]
    %v467 = vld [vmem:[#allocation5 + $0xf0] sm:$0xff]
    %v468 = vld [vmem:[#allocation5 + $0xf8] sm:$0xff]
    %v469 = vld [vmem:[#allocation5 + $0x100] sm:$0xff]
    %v470 = vld [vmem:[#allocation5 + $0x108] sm:$0xff]
    %v471 = vld [vmem:[#allocation5 + $0x110] sm:$0xff]
    %v472 = vld [vmem:[#allocation5 + $0x118] sm:$0xff]
    %v473 = vld [vmem:[#allocation5 + $0x120] sm:$0xff]
    %v474 = vld [vmem:[#allocation5 + $0x128] sm:$0xff]
    %v475 = vld [vmem:[#allocation5 + $0x130] sm:$0xff]
    %v476 = vld [vmem:[#allocation5 + $0x138] sm:$0xff]
    %v477 = vld [vmem:[#allocation5 + $0x140] sm:$0xff]
    %v478 = vld [vmem:[#allocation5 + $0x148] sm:$0xff]
    %v479 = vld [vmem:[#allocation5 + $0x150] sm:$0xff]
    %v480 = vld [vmem:[#allocation5 + $0x158] sm:$0xff]
    %v481 = vld [vmem:[#allocation5 + $0x160] sm:$0xff]
    %v482 = vld [vmem:[#allocation5 + $0x168] sm:$0xff]
    %v483 = vld [vmem:[#allocation5 + $0x170] sm:$0xff]
    %v484 = vld [vmem:[#allocation5 + $0x178] sm:$0xff]
    %v485 = vld [vmem:[#allocation5 + $0x180] sm:$0xff]
    %v486 = vld [vmem:[#allocation5 + $0x188] sm:$0xff]
    %v487 = vld [vmem:[#allocation5 + $0x190] sm:$0xff]
    %v488 = vld [vmem:[#allocation5 + $0x198] sm:$0xff]
    %v489 = vld [vmem:[#allocation5 + $0x1a0] sm:$0xff]
    %v490 = vld [vmem:[#allocation5 + $0x1a8] sm:$0xff]
    %v491 = vld [vmem:[#allocation5 + $0x1b0] sm:$0xff]
    %v492 = vld [vmem:[#allocation5 + $0x1b8] sm:$0xff]
    %v493 = vld [vmem:[#allocation5 + $0x1c0] sm:$0xff]
    %v494 = vld [vmem:[#allocation5 + $0x1c8] sm:$0xff]
    %v495 = vld [vmem:[#allocation5 + $0x1d0] sm:$0xff]
    %v496 = vld [vmem:[#allocation5 + $0x1d8] sm:$0xff]
    %v497 = vld [vmem:[#allocation5 + $0x1e0] sm:$0xff]
    %v498 = vld [vmem:[#allocation5 + $0x1e8] sm:$0xff]
    %v499 = vld [vmem:[#allocation5 + $0x1f0] sm:$0xff]
    %v500 = vld [vmem:[#allocation5 + $0x1f8] sm:$0xff]
    %v501 = vld [vmem:[#allocation5 + $0x200] sm:$0xff]
    %v502 = vld [vmem:[#allocation5 + $0x208] sm:$0xff]
    %v503 = vld [vmem:[#allocation5 + $0x210] sm:$0xff]
    %v504 = vld [vmem:[#allocation5 + $0x218] sm:$0xff]
    %v505 = vld [vmem:[#allocation5 + $0x220] sm:$0xff]
    %v506 = vld [vmem:[#allocation5 + $0x228] sm:$0xff]
    %v507 = vld [vmem:[#allocation5 + $0x230] sm:$0xff]
    %v508 = vld [vmem:[#allocation5 + $0x238] sm:$0xff]
    %v509 = vld [vmem:[#allocation5 + $0x240] sm:$0xff]
    %v510 = vld [vmem:[#allocation5 + $0x248] sm:$0xff]
    %v511 = vld [vmem:[#allocation5 + $0x250] sm:$0xff]
    %v512 = vld [vmem:[#allocation5 + $0x258] sm:$0xff]
    %v513 = vld [vmem:[#allocation5 + $0x260] sm:$0xff]
    %v514 = vld [vmem:[#allocation5 + $0x268] sm:$0xff]
    %v515 = vld [vmem:[#allocation5 + $0x270] sm:$0xff]
    %v516 = vld [vmem:[#allocation5 + $0x278] sm:$0xff]
    %v517 = vld [vmem:[#allocation5 + $0x280] sm:$0xff]
    %v518 = vld [vmem:[#allocation5 + $0x288] sm:$0xff]
    %v519 = vld [vmem:[#allocation5 + $0x290] sm:$0xff]
    %v520 = vld [vmem:[#allocation5 + $0x298] sm:$0xff]
    %v521 = vld [vmem:[#allocation5 + $0x2a0] sm:$0xff]
    %v522 = vld [vmem:[#allocation5 + $0x2a8] sm:$0xff]
    %v523 = vld [vmem:[#allocation5 + $0x2b0] sm:$0xff]
    %v524 = vld [vmem:[#allocation5 + $0x2b8] sm:$0xff]
    %v525 = vld [vmem:[#allocation5 + $0x2c0] sm:$0xff]
    %v526 = vld [vmem:[#allocation5 + $0x2c8] sm:$0xff]
    %v527 = vld [vmem:[#allocation5 + $0x2d0] sm:$0xff]
    %v528 = vld [vmem:[#allocation5 + $0x2d8] sm:$0xff]
    %v529 = vld [vmem:[#allocation5 + $0x2e0] sm:$0xff]
    %v530 = vld [vmem:[#allocation5 + $0x2e8] sm:$0xff]
    %v531 = vld [vmem:[#allocation5 + $0x2f0] sm:$0xff]
    %v532 = vld [vmem:[#allocation5 + $0x2f8] sm:$0xff]
    %v533 = vld [vmem:[#allocation5 + $0x300] sm:$0xff]
    %v534 = vld [vmem:[#allocation5 + $0x308] sm:$0xff]
    %v535 = vld [vmem:[#allocation5 + $0x310] sm:$0xff]
    %v536 = vld [vmem:[#allocation5 + $0x318] sm:$0xff]
    %v537 = vld [vmem:[#allocation5 + $0x320] sm:$0xff]
    %v538 = vld [vmem:[#allocation5 + $0x328] sm:$0xff]
    %v539 = vld [vmem:[#allocation5 + $0x330] sm:$0xff]
    %v540 = vld [vmem:[#allocation5 + $0x338] sm:$0xff]
    %v541 = vld [vmem:[#allocation5 + $0x340] sm:$0xff]
    %v542 = vld [vmem:[#allocation5 + $0x348] sm:$0xff]
    %v543 = vld [vmem:[#allocation5 + $0x350] sm:$0xff]
    %v544 = vld [vmem:[#allocation5 + $0x358] sm:$0xff]
    %v545 = vld [vmem:[#allocation5 + $0x360] sm:$0xff]
    %v546 = vld [vmem:[#allocation5 + $0x368] sm:$0xff]
    %v547 = vld [vmem:[#allocation5 + $0x370] sm:$0xff]
    %v548 = vld [vmem:[#allocation5 + $0x378] sm:$0xff]
    %v549 = vld [vmem:[#allocation5 + $0x380] sm:$0xff]
    %v550 = vld [vmem:[#allocation5 + $0x388] sm:$0xff]
    %v551 = vld [vmem:[#allocation5 + $0x390] sm:$0xff]
    %v552 = vld [vmem:[#allocation5 + $0x398] sm:$0xff]
    %v553 = vld [vmem:[#allocation5 + $0x3a0] sm:$0xff]
    %v554 = vld [vmem:[#allocation5 + $0x3a8] sm:$0xff]
    %v555 = vld [vmem:[#allocation5 + $0x3b0] sm:$0xff]
    %v556 = vld [vmem:[#allocation5 + $0x3b8] sm:$0xff]
    %v557 = vld [vmem:[#allocation5 + $0x3c0] sm:$0xff]
    %v558 = vld [vmem:[#allocation5 + $0x3c8] sm:$0xff]
    %v559 = vld [vmem:[#allocation5 + $0x3d0] sm:$0xff]
    %v560 = vld [vmem:[#allocation5 + $0x3d8] sm:$0xff]
    %v561 = vld [vmem:[#allocation5 + $0x3e0] sm:$0xff]
    %v562 = vld [vmem:[#allocation5 + $0x3e8] sm:$0xff]
    %v563 = vld [vmem:[#allocation5 + $0x3f0] sm:$0xff]
    %v564 = vld [vmem:[#allocation5 + $0x3f8] sm:$0xff]
    %v565 = vld [vmem:[%s4] sm:$0xf]
    %v567 = vlaneseq
    %v568 = vshrl.u32 %v567, 7
    %v569 = vsub.s32 0, %v568
    %v570 = vrot.slane %v565, %v569
    %v571 = vlaneseq
    %v572 = vshrl.u32 %v571, 7
    %v573 = vsub.s32 1, %v572
    %v574 = vrot.slane %v565, %v573
    %v575 = vlaneseq
    %v576 = vshrl.u32 %v575, 7
    %v577 = vsub.s32 2, %v576
    %v578 = vrot.slane %v565, %v577
    %v579 = vlaneseq
    %v580 = vshrl.u32 %v579, 7
    %v581 = vsub.s32 3, %v580
    %v582 = vrot.slane %v565, %v581
    %v715 = vunpack.c.l.b16 %v437
    %v716 = vunpack.c.h.b16 %v437
    %v717 = vunpack.c.l.b16 %v438
    %v718 = vunpack.c.h.b16 %v438
    %v719 = vunpack.c.l.b16 %v439
    %v720 = vunpack.c.h.b16 %v439
    %v721 = vunpack.c.l.b16 %v440
    %v722 = vunpack.c.h.b16 %v440
    %v723 = vunpack.c.l.b16 %v441
    %v724 = vunpack.c.h.b16 %v441
    %v725 = vunpack.c.l.b16 %v442
    %v726 = vunpack.c.h.b16 %v442
    %v727 = vunpack.c.l.b16 %v443
    %v728 = vunpack.c.h.b16 %v443
    %v729 = vunpack.c.l.b16 %v444
    %v730 = vunpack.c.h.b16 %v444
    %v731 = vunpack.c.l.b16 %v445
    %v732 = vunpack.c.h.b16 %v445
    %v733 = vunpack.c.l.b16 %v446
    %v734 = vunpack.c.h.b16 %v446
    %v735 = vunpack.c.l.b16 %v447
    %v736 = vunpack.c.h.b16 %v447
    %v737 = vunpack.c.l.b16 %v448
    %v738 = vunpack.c.h.b16 %v448
    %v739 = vunpack.c.l.b16 %v449
    %v740 = vunpack.c.h.b16 %v449
    %v741 = vunpack.c.l.b16 %v450
    %v742 = vunpack.c.h.b16 %v450
    %v743 = vunpack.c.l.b16 %v451
    %v744 = vunpack.c.h.b16 %v451
    %v745 = vunpack.c.l.b16 %v452
    %v746 = vunpack.c.h.b16 %v452
    %v747 = vunpack.c.l.b16 %v453
    %v748 = vunpack.c.h.b16 %v453
    %v749 = vunpack.c.l.b16 %v454
    %v750 = vunpack.c.h.b16 %v454
    %v751 = vunpack.c.l.b16 %v455
    %v752 = vunpack.c.h.b16 %v455
    %v753 = vunpack.c.l.b16 %v456
    %v754 = vunpack.c.h.b16 %v456
    %v755 = vunpack.c.l.b16 %v457
    %v756 = vunpack.c.h.b16 %v457
    %v757 = vunpack.c.l.b16 %v458
    %v758 = vunpack.c.h.b16 %v458
    %v759 = vunpack.c.l.b16 %v459
    %v760 = vunpack.c.h.b16 %v459
    %v761 = vunpack.c.l.b16 %v460
    %v762 = vunpack.c.h.b16 %v460
    %v763 = vunpack.c.l.b16 %v461
    %v764 = vunpack.c.h.b16 %v461
    %v765 = vunpack.c.l.b16 %v462
    %v766 = vunpack.c.h.b16 %v462
    %v767 = vunpack.c.l.b16 %v463
    %v768 = vunpack.c.h.b16 %v463
    %v769 = vunpack.c.l.b16 %v464
    %v770 = vunpack.c.h.b16 %v464
    %v771 = vunpack.c.l.b16 %v465
    %v772 = vunpack.c.h.b16 %v465
    %v773 = vunpack.c.l.b16 %v466
    %v774 = vunpack.c.h.b16 %v466
    %v775 = vunpack.c.l.b16 %v467
    %v776 = vunpack.c.h.b16 %v467
    %v777 = vunpack.c.l.b16 %v468
    %v778 = vunpack.c.h.b16 %v468
    %v779 = vunpack.c.l.b16 %v469
    %v780 = vunpack.c.h.b16 %v469
    %v781 = vunpack.c.l.b16 %v470
    %v782 = vunpack.c.h.b16 %v470
    %v783 = vunpack.c.l.b16 %v471
    %v784 = vunpack.c.h.b16 %v471
    %v785 = vunpack.c.l.b16 %v472
    %v786 = vunpack.c.h.b16 %v472
    %v787 = vunpack.c.l.b16 %v473
    %v788 = vunpack.c.h.b16 %v473
    %v789 = vunpack.c.l.b16 %v474
    %v790 = vunpack.c.h.b16 %v474
    %v791 = vunpack.c.l.b16 %v475
    %v792 = vunpack.c.h.b16 %v475
    %v793 = vunpack.c.l.b16 %v476
    %v794 = vunpack.c.h.b16 %v476
    %v795 = vunpack.c.l.b16 %v477
    %v796 = vunpack.c.h.b16 %v477
    %v797 = vunpack.c.l.b16 %v478
    %v798 = vunpack.c.h.b16 %v478
    %v799 = vunpack.c.l.b16 %v479
    %v800 = vunpack.c.h.b16 %v479
    %v801 = vunpack.c.l.b16 %v480
    %v802 = vunpack.c.h.b16 %v480
    %v803 = vunpack.c.l.b16 %v481
    %v804 = vunpack.c.h.b16 %v481
    %v805 = vunpack.c.l.b16 %v482
    %v806 = vunpack.c.h.b16 %v482
    %v807 = vunpack.c.l.b16 %v483
    %v808 = vunpack.c.h.b16 %v483
    %v809 = vunpack.c.l.b16 %v484
    %v810 = vunpack.c.h.b16 %v484
    %v811 = vunpack.c.l.b16 %v485
    %v812 = vunpack.c.h.b16 %v485
    %v813 = vunpack.c.l.b16 %v486
    %v814 = vunpack.c.h.b16 %v486
    %v815 = vunpack.c.l.b16 %v487
    %v816 = vunpack.c.h.b16 %v487
    %v817 = vunpack.c.l.b16 %v488
    %v818 = vunpack.c.h.b16 %v488
    %v819 = vunpack.c.l.b16 %v489
    %v820 = vunpack.c.h.b16 %v489
    %v821 = vunpack.c.l.b16 %v490
    %v822 = vunpack.c.h.b16 %v490
    %v823 = vunpack.c.l.b16 %v491
    %v824 = vunpack.c.h.b16 %v491
    %v825 = vunpack.c.l.b16 %v492
    %v826 = vunpack.c.h.b16 %v492
    %v827 = vunpack.c.l.b16 %v493
    %v828 = vunpack.c.h.b16 %v493
    %v829 = vunpack.c.l.b16 %v494
    %v830 = vunpack.c.h.b16 %v494
    %v831 = vunpack.c.l.b16 %v495
    %v832 = vunpack.c.h.b16 %v495
    %v833 = vunpack.c.l.b16 %v496
    %v834 = vunpack.c.h.b16 %v496
    %v835 = vunpack.c.l.b16 %v497
    %v836 = vunpack.c.h.b16 %v497
    %v837 = vunpack.c.l.b16 %v498
    %v838 = vunpack.c.h.b16 %v498
    %v839 = vunpack.c.l.b16 %v499
    %v840 = vunpack.c.h.b16 %v499
    %v841 = vunpack.c.l.b16 %v500
    %v842 = vunpack.c.h.b16 %v500
    %v843 = vunpack.c.l.b16 %v501
    %v844 = vunpack.c.h.b16 %v501
    %v845 = vunpack.c.l.b16 %v502
    %v846 = vunpack.c.h.b16 %v502
    %v847 = vunpack.c.l.b16 %v503
    %v848 = vunpack.c.h.b16 %v503
    %v849 = vunpack.c.l.b16 %v504
    %v850 = vunpack.c.h.b16 %v504
    %v851 = vunpack.c.l.b16 %v505
    %v852 = vunpack.c.h.b16 %v505
    %v853 = vunpack.c.l.b16 %v506
    %v854 = vunpack.c.h.b16 %v506
    %v855 = vunpack.c.l.b16 %v507
    %v856 = vunpack.c.h.b16 %v507
    %v857 = vunpack.c.l.b16 %v508
    %v858 = vunpack.c.h.b16 %v508
    %v859 = vunpack.c.l.b16 %v509
    %v860 = vunpack.c.h.b16 %v509
    %v861 = vunpack.c.l.b16 %v510
    %v862 = vunpack.c.h.b16 %v510
    %v863 = vunpack.c.l.b16 %v511
    %v864 = vunpack.c.h.b16 %v511
    %v865 = vunpack.c.l.b16 %v512
    %v866 = vunpack.c.h.b16 %v512
    %v867 = vunpack.c.l.b16 %v513
    %v868 = vunpack.c.h.b16 %v513
    %v869 = vunpack.c.l.b16 %v514
    %v870 = vunpack.c.h.b16 %v514
    %v871 = vunpack.c.l.b16 %v515
    %v872 = vunpack.c.h.b16 %v515
    %v873 = vunpack.c.l.b16 %v516
    %v874 = vunpack.c.h.b16 %v516
    %v875 = vunpack.c.l.b16 %v517
    %v876 = vunpack.c.h.b16 %v517
    %v877 = vunpack.c.l.b16 %v518
    %v878 = vunpack.c.h.b16 %v518
    %v879 = vunpack.c.l.b16 %v519
    %v880 = vunpack.c.h.b16 %v519
    %v881 = vunpack.c.l.b16 %v520
    %v882 = vunpack.c.h.b16 %v520
    %v883 = vunpack.c.l.b16 %v521
    %v884 = vunpack.c.h.b16 %v521
    %v885 = vunpack.c.l.b16 %v522
    %v886 = vunpack.c.h.b16 %v522
    %v887 = vunpack.c.l.b16 %v523
    %v888 = vunpack.c.h.b16 %v523
    %v889 = vunpack.c.l.b16 %v524
    %v890 = vunpack.c.h.b16 %v524
    %v891 = vunpack.c.l.b16 %v525
    %v892 = vunpack.c.h.b16 %v525
    %v893 = vunpack.c.l.b16 %v526
    %v894 = vunpack.c.h.b16 %v526
    %v895 = vunpack.c.l.b16 %v527
    %v896 = vunpack.c.h.b16 %v527
    %v897 = vunpack.c.l.b16 %v528
    %v898 = vunpack.c.h.b16 %v528
    %v899 = vunpack.c.l.b16 %v529
    %v900 = vunpack.c.h.b16 %v529
    %v901 = vunpack.c.l.b16 %v530
    %v902 = vunpack.c.h.b16 %v530
    %v903 = vunpack.c.l.b16 %v531
    %v904 = vunpack.c.h.b16 %v531
    %v905 = vunpack.c.l.b16 %v532
    %v906 = vunpack.c.h.b16 %v532
    %v907 = vunpack.c.l.b16 %v533
    %v908 = vunpack.c.h.b16 %v533
    %v909 = vunpack.c.l.b16 %v534
    %v910 = vunpack.c.h.b16 %v534
    %v911 = vunpack.c.l.b16 %v535
    %v912 = vunpack.c.h.b16 %v535
    %v913 = vunpack.c.l.b16 %v536
    %v914 = vunpack.c.h.b16 %v536
    %v915 = vunpack.c.l.b16 %v537
    %v916 = vunpack.c.h.b16 %v537
    %v917 = vunpack.c.l.b16 %v538
    %v918 = vunpack.c.h.b16 %v538
    %v919 = vunpack.c.l.b16 %v539
    %v920 = vunpack.c.h.b16 %v539
    %v921 = vunpack.c.l.b16 %v540
    %v922 = vunpack.c.h.b16 %v540
    %v923 = vunpack.c.l.b16 %v541
    %v924 = vunpack.c.h.b16 %v541
    %v925 = vunpack.c.l.b16 %v542
    %v926 = vunpack.c.h.b16 %v542
    %v927 = vunpack.c.l.b16 %v543
    %v928 = vunpack.c.h.b16 %v543
    %v929 = vunpack.c.l.b16 %v544
    %v930 = vunpack.c.h.b16 %v544
    %v931 = vunpack.c.l.b16 %v545
    %v932 = vunpack.c.h.b16 %v545
    %v933 = vunpack.c.l.b16 %v546
    %v934 = vunpack.c.h.b16 %v546
    %v935 = vunpack.c.l.b16 %v547
    %v936 = vunpack.c.h.b16 %v547
    %v937 = vunpack.c.l.b16 %v548
    %v938 = vunpack.c.h.b16 %v548
    %v939 = vunpack.c.l.b16 %v549
    %v940 = vunpack.c.h.b16 %v549
    %v941 = vunpack.c.l.b16 %v550
    %v942 = vunpack.c.h.b16 %v550
    %v943 = vunpack.c.l.b16 %v551
    %v944 = vunpack.c.h.b16 %v551
    %v945 = vunpack.c.l.b16 %v552
    %v946 = vunpack.c.h.b16 %v552
    %v947 = vunpack.c.l.b16 %v553
    %v948 = vunpack.c.h.b16 %v553
    %v949 = vunpack.c.l.b16 %v554
    %v950 = vunpack.c.h.b16 %v554
    %v951 = vunpack.c.l.b16 %v555
    %v952 = vunpack.c.h.b16 %v555
    %v953 = vunpack.c.l.b16 %v556
    %v954 = vunpack.c.h.b16 %v556
    %v955 = vunpack.c.l.b16 %v557
    %v956 = vunpack.c.h.b16 %v557
    %v957 = vunpack.c.l.b16 %v558
    %v958 = vunpack.c.h.b16 %v558
    %v959 = vunpack.c.l.b16 %v559
    %v960 = vunpack.c.h.b16 %v559
    %v961 = vunpack.c.l.b16 %v560
    %v962 = vunpack.c.h.b16 %v560
    %v963 = vunpack.c.l.b16 %v561
    %v964 = vunpack.c.h.b16 %v561
    %v965 = vunpack.c.l.b16 %v562
    %v966 = vunpack.c.h.b16 %v562
    %v967 = vunpack.c.l.b16 %v563
    %v968 = vunpack.c.h.b16 %v563
    %v969 = vunpack.c.l.b16 %v564
    %v970 = vunpack.c.h.b16 %v564
    %v971 = vpack.c.b16 %v719, %v715
    %v972 = vpack.c.b16 %v720, %v716
    %v973 = vpack.c.b16 %v721, %v717
    %v974 = vpack.c.b16 %v722, %v718
    %v975 = vpack.c.b16 %v727, %v723
    %v976 = vpack.c.b16 %v728, %v724
    %v977 = vpack.c.b16 %v729, %v725
    %v978 = vpack.c.b16 %v730, %v726
    %v979 = vpack.c.b16 %v735, %v731
    %v980 = vpack.c.b16 %v736, %v732
    %v981 = vpack.c.b16 %v737, %v733
    %v982 = vpack.c.b16 %v738, %v734
    %v983 = vpack.c.b16 %v743, %v739
    %v984 = vpack.c.b16 %v744, %v740
    %v985 = vpack.c.b16 %v745, %v741
    %v986 = vpack.c.b16 %v746, %v742
    %v987 = vpack.c.b16 %v751, %v747
    %v988 = vpack.c.b16 %v752, %v748
    %v989 = vpack.c.b16 %v753, %v749
    %v990 = vpack.c.b16 %v754, %v750
    %v991 = vpack.c.b16 %v759, %v755
    %v992 = vpack.c.b16 %v760, %v756
    %v993 = vpack.c.b16 %v761, %v757
    %v994 = vpack.c.b16 %v762, %v758
    %v995 = vpack.c.b16 %v767, %v763
    %v996 = vpack.c.b16 %v768, %v764
    %v997 = vpack.c.b16 %v769, %v765
    %v998 = vpack.c.b16 %v770, %v766
    %v999 = vpack.c.b16 %v775, %v771
    %v1000 = vpack.c.b16 %v776, %v772
    %v1001 = vpack.c.b16 %v777, %v773
    %v1002 = vpack.c.b16 %v778, %v774
    %v1003 = vpack.c.b16 %v783, %v779
    %v1004 = vpack.c.b16 %v784, %v780
    %v1005 = vpack.c.b16 %v785, %v781
    %v1006 = vpack.c.b16 %v786, %v782
    %v1007 = vpack.c.b16 %v791, %v787
    %v1008 = vpack.c.b16 %v792, %v788
    %v1009 = vpack.c.b16 %v793, %v789
    %v1010 = vpack.c.b16 %v794, %v790
    %v1011 = vpack.c.b16 %v799, %v795
    %v1012 = vpack.c.b16 %v800, %v796
    %v1013 = vpack.c.b16 %v801, %v797
    %v1014 = vpack.c.b16 %v802, %v798
    %v1015 = vpack.c.b16 %v807, %v803
    %v1016 = vpack.c.b16 %v808, %v804
    %v1017 = vpack.c.b16 %v809, %v805
    %v1018 = vpack.c.b16 %v810, %v806
    %v1019 = vpack.c.b16 %v815, %v811
    %v1020 = vpack.c.b16 %v816, %v812
    %v1021 = vpack.c.b16 %v817, %v813
    %v1022 = vpack.c.b16 %v818, %v814
    %v1023 = vpack.c.b16 %v823, %v819
    %v1024 = vpack.c.b16 %v824, %v820
    %v1025 = vpack.c.b16 %v825, %v821
    %v1026 = vpack.c.b16 %v826, %v822
    %v1027 = vpack.c.b16 %v831, %v827
    %v1028 = vpack.c.b16 %v832, %v828
    %v1029 = vpack.c.b16 %v833, %v829
    %v1030 = vpack.c.b16 %v834, %v830
    %v1031 = vpack.c.b16 %v839, %v835
    %v1032 = vpack.c.b16 %v840, %v836
    %v1033 = vpack.c.b16 %v841, %v837
    %v1034 = vpack.c.b16 %v842, %v838
    %v1035 = vpack.c.b16 %v847, %v843
    %v1036 = vpack.c.b16 %v848, %v844
    %v1037 = vpack.c.b16 %v849, %v845
    %v1038 = vpack.c.b16 %v850, %v846
    %v1039 = vpack.c.b16 %v855, %v851
    %v1040 = vpack.c.b16 %v856, %v852
    %v1041 = vpack.c.b16 %v857, %v853
    %v1042 = vpack.c.b16 %v858, %v854
    %v1043 = vpack.c.b16 %v863, %v859
    %v1044 = vpack.c.b16 %v864, %v860
    %v1045 = vpack.c.b16 %v865, %v861
    %v1046 = vpack.c.b16 %v866, %v862
    %v1047 = vpack.c.b16 %v871, %v867
    %v1048 = vpack.c.b16 %v872, %v868
    %v1049 = vpack.c.b16 %v873, %v869
    %v1050 = vpack.c.b16 %v874, %v870
    %v1051 = vpack.c.b16 %v879, %v875
    %v1052 = vpack.c.b16 %v880, %v876
    %v1053 = vpack.c.b16 %v881, %v877
    %v1054 = vpack.c.b16 %v882, %v878
    %v1055 = vpack.c.b16 %v887, %v883
    %v1056 = vpack.c.b16 %v888, %v884
    %v1057 = vpack.c.b16 %v889, %v885
    %v1058 = vpack.c.b16 %v890, %v886
    %v1059 = vpack.c.b16 %v895, %v891
    %v1060 = vpack.c.b16 %v896, %v892
    %v1061 = vpack.c.b16 %v897, %v893
    %v1062 = vpack.c.b16 %v898, %v894
    %v1063 = vpack.c.b16 %v903, %v899
    %v1064 = vpack.c.b16 %v904, %v900
    %v1065 = vpack.c.b16 %v905, %v901
    %v1066 = vpack.c.b16 %v906, %v902
    %v1067 = vpack.c.b16 %v911, %v907
    %v1068 = vpack.c.b16 %v912, %v908
    %v1069 = vpack.c.b16 %v913, %v909
    %v1070 = vpack.c.b16 %v914, %v910
    %v1071 = vpack.c.b16 %v919, %v915
    %v1072 = vpack.c.b16 %v920, %v916
    %v1073 = vpack.c.b16 %v921, %v917
    %v1074 = vpack.c.b16 %v922, %v918
    %v1075 = vpack.c.b16 %v927, %v923
    %v1076 = vpack.c.b16 %v928, %v924
    %v1077 = vpack.c.b16 %v929, %v925
    %v1078 = vpack.c.b16 %v930, %v926
    %v1079 = vpack.c.b16 %v935, %v931
    %v1080 = vpack.c.b16 %v936, %v932
    %v1081 = vpack.c.b16 %v937, %v933
    %v1082 = vpack.c.b16 %v938, %v934
    %v1083 = vpack.c.b16 %v943, %v939
    %v1084 = vpack.c.b16 %v944, %v940
    %v1085 = vpack.c.b16 %v945, %v941
    %v1086 = vpack.c.b16 %v946, %v942
    %v1087 = vpack.c.b16 %v951, %v947
    %v1088 = vpack.c.b16 %v952, %v948
    %v1089 = vpack.c.b16 %v953, %v949
    %v1090 = vpack.c.b16 %v954, %v950
    %v1091 = vpack.c.b16 %v959, %v955
    %v1092 = vpack.c.b16 %v960, %v956
    %v1093 = vpack.c.b16 %v961, %v957
    %v1094 = vpack.c.b16 %v962, %v958
    %v1095 = vpack.c.b16 %v967, %v963
    %v1096 = vpack.c.b16 %v968, %v964
    %v1097 = vpack.c.b16 %v969, %v965
    %v1098 = vpack.c.b16 %v970, %v966
    %1227 = vmatprep.subr.bf16.mxu0 %v972
    %1228 = vmatpush1.bf16.msra.mxu0 %v971
    %1229 = vmatprep.subr.bf16.mxu0 %v976
    %1230 = vmatpush1.bf16.msra.mxu0 %v975
    %1231 = vmatprep.subr.bf16.mxu0 %v980
    %1232 = vmatpush1.bf16.msra.mxu0 %v979
    %1233 = vmatprep.subr.bf16.mxu0 %v984
    %1234 = vmatpush1.bf16.msra.mxu0 %v983
    %1235 = vmatprep.subr.bf16.mxu0 %v988
    %1236 = vmatpush1.bf16.msra.mxu0 %v987
    %1237 = vmatprep.subr.bf16.mxu0 %v992
    %1238 = vmatpush1.bf16.msra.mxu0 %v991
    %1239 = vmatprep.subr.bf16.mxu0 %v996
    %1240 = vmatpush1.bf16.msra.mxu0 %v995
    %1241 = vmatprep.subr.bf16.mxu0 %v1000
    %1242 = vmatpush1.bf16.msra.mxu0 %v999
    %1243 = vmatprep.subr.bf16.mxu0 %v1004
    %1244 = vmatpush1.bf16.msra.mxu0 %v1003
    %1245 = vmatprep.subr.bf16.mxu0 %v1008
    %1246 = vmatpush1.bf16.msra.mxu0 %v1007
    %1247 = vmatprep.subr.bf16.mxu0 %v1012
    %1248 = vmatpush1.bf16.msra.mxu0 %v1011
    %1249 = vmatprep.subr.bf16.mxu0 %v1016
    %1250 = vmatpush1.bf16.msra.mxu0 %v1015
    %1251 = vmatprep.subr.bf16.mxu0 %v1020
    %1252 = vmatpush1.bf16.msra.mxu0 %v1019
    %1253 = vmatprep.subr.bf16.mxu0 %v1024
    %1254 = vmatpush1.bf16.msra.mxu0 %v1023
    %1255 = vmatprep.subr.bf16.mxu0 %v1028
    %1256 = vmatpush1.bf16.msra.mxu0 %v1027
    %1257 = vmatprep.subr.bf16.mxu0 %v1032
    %1258 = vmatpush1.bf16.msra.mxu0 %v1031
    %1259 = vmatprep.mubr.bf16.mxu0 %v430
    %1260 = vmatmul.mubr.bf16.gmra.mrb[0].mxu0 %v429
    %v1261 = vpop.f32.mrb[0].mxu0
    %v1262 = vadd.f32 %v570, %v1261
    %v1263 = vpop.f32.mrb[0].mxu0
    %v1264 = vadd.f32 %v574, %v1263
    %v1265 = vpop.f32.mrb[0].mxu0
    %v1266 = vadd.f32 %v570, %v1265
    %v1267 = vpop.f32.mrb[0].mxu0
    %v1268 = vadd.f32 %v574, %v1267
    %1269 = vdwg.mxu0
    %1270 = vmatprep.subr.bf16.mxu0 %v1036
    %1271 = vmatpush1.bf16.msra.mxu0 %v1035
    %1272 = vmatprep.subr.bf16.mxu0 %v1040
    %1273 = vmatpush1.bf16.msra.mxu0 %v1039
    %1274 = vmatprep.subr.bf16.mxu0 %v1044
    %1275 = vmatpush1.bf16.msra.mxu0 %v1043
    %1276 = vmatprep.subr.bf16.mxu0 %v1048
    %1277 = vmatpush1.bf16.msra.mxu0 %v1047
    %1278 = vmatprep.subr.bf16.mxu0 %v1052
    %1279 = vmatpush1.bf16.msra.mxu0 %v1051
    %1280 = vmatprep.subr.bf16.mxu0 %v1056
    %1281 = vmatpush1.bf16.msra.mxu0 %v1055
    %1282 = vmatprep.subr.bf16.mxu0 %v1060
    %1283 = vmatpush1.bf16.msra.mxu0 %v1059
    %1284 = vmatprep.subr.bf16.mxu0 %v1064
    %1285 = vmatpush1.bf16.msra.mxu0 %v1063
    %1286 = vmatprep.subr.bf16.mxu0 %v1068
    %1287 = vmatpush1.bf16.msra.mxu0 %v1067
    %1288 = vmatprep.subr.bf16.mxu0 %v1072
    %1289 = vmatpush1.bf16.msra.mxu0 %v1071
    %1290 = vmatprep.subr.bf16.mxu0 %v1076
    %1291 = vmatpush1.bf16.msra.mxu0 %v1075
    %1292 = vmatprep.subr.bf16.mxu0 %v1080
    %1293 = vmatpush1.bf16.msra.mxu0 %v1079
    %1294 = vmatprep.subr.bf16.mxu0 %v1084
    %1295 = vmatpush1.bf16.msra.mxu0 %v1083
    %1296 = vmatprep.subr.bf16.mxu0 %v1088
    %1297 = vmatpush1.bf16.msra.mxu0 %v1087
    %1298 = vmatprep.subr.bf16.mxu0 %v1092
    %1299 = vmatpush1.bf16.msra.mxu0 %v1091
    %1300 = vmatprep.subr.bf16.mxu0 %v1096
    %1301 = vmatpush1.bf16.msra.mxu0 %v1095
    %1302 = vmatprep.mubr.bf16.mxu0 %v432
    %1303 = vmatmul.mubr.bf16.gmra.mrb[0].mxu0 %v431
    %v1304 = vpop.f32.mrb[0].mxu0
    %v1305 = vadd.f32 %v1262, %v1304
    %v1306 = vpop.f32.mrb[0].mxu0
    %v1307 = vadd.f32 %v1264, %v1306
    %v1308 = vpop.f32.mrb[0].mxu0
    %v1309 = vadd.f32 %v1266, %v1308
    %v1310 = vpop.f32.mrb[0].mxu0
    %v1311 = vadd.f32 %v1268, %v1310
    %1312 = vdwg.mxu0
    %1313 = vmatprep.subr.bf16.mxu0 %v974
    %1314 = vmatpush1.bf16.msra.mxu0 %v973
    %1315 = vmatprep.subr.bf16.mxu0 %v978
    %1316 = vmatpush1.bf16.msra.mxu0 %v977
    %1317 = vmatprep.subr.bf16.mxu0 %v982
    %1318 = vmatpush1.bf16.msra.mxu0 %v981
    %1319 = vmatprep.subr.bf16.mxu0 %v986
    %1320 = vmatpush1.bf16.msra.mxu0 %v985
    %1321 = vmatprep.subr.bf16.mxu0 %v990
    %1322 = vmatpush1.bf16.msra.mxu0 %v989
    %1323 = vmatprep.subr.bf16.mxu0 %v994
    %1324 = vmatpush1.bf16.msra.mxu0 %v993
    %1325 = vmatprep.subr.bf16.mxu0 %v998
    %1326 = vmatpush1.bf16.msra.mxu0 %v997
    %1327 = vmatprep.subr.bf16.mxu0 %v1002
    %1328 = vmatpush1.bf16.msra.mxu0 %v1001
    %1329 = vmatprep.subr.bf16.mxu0 %v1006
    %1330 = vmatpush1.bf16.msra.mxu0 %v1005
    %1331 = vmatprep.subr.bf16.mxu0 %v1010
    %1332 = vmatpush1.bf16.msra.mxu0 %v1009
    %1333 = vmatprep.subr.bf16.mxu0 %v1014
    %1334 = vmatpush1.bf16.msra.mxu0 %v1013
    %1335 = vmatprep.subr.bf16.mxu0 %v1018
    %1336 = vmatpush1.bf16.msra.mxu0 %v1017
    %1337 = vmatprep.subr.bf16.mxu0 %v1022
    %1338 = vmatpush1.bf16.msra.mxu0 %v1021
    %1339 = vmatprep.subr.bf16.mxu0 %v1026
    %1340 = vmatpush1.bf16.msra.mxu0 %v1025
    %1341 = vmatprep.subr.bf16.mxu0 %v1030
    %1342 = vmatpush1.bf16.msra.mxu0 %v1029
    %1343 = vmatprep.subr.bf16.mxu0 %v1034
    %1344 = vmatpush1.bf16.msra.mxu0 %v1033
    %1345 = vmatprep.mubr.bf16.mxu0 %v430
    %1346 = vmatmul.mubr.bf16.gmra.mrb[0].mxu0 %v429
    %v1347 = vpop.f32.mrb[0].mxu0
    %v1348 = vadd.f32 %v578, %v1347
    %v1349 = vpop.f32.mrb[0].mxu0
    %v1350 = vadd.f32 %v582, %v1349
    %v1351 = vpop.f32.mrb[0].mxu0
    %v1352 = vadd.f32 %v578, %v1351
    %v1353 = vpop.f32.mrb[0].mxu0
    %v1354 = vadd.f32 %v582, %v1353
    %1355 = vdwg.mxu0
    %1356 = vmatprep.subr.bf16.mxu0 %v1038
    %1357 = vmatpush1.bf16.msra.mxu0 %v1037
    %1358 = vmatprep.subr.bf16.mxu0 %v1042
    %1359 = vmatpush1.bf16.msra.mxu0 %v1041
    %1360 = vmatprep.subr.bf16.mxu0 %v1046
    %1361 = vmatpush1.bf16.msra.mxu0 %v1045
    %1362 = vmatprep.subr.bf16.mxu0 %v1050
    %1363 = vmatpush1.bf16.msra.mxu0 %v1049
    %1364 = vmatprep.subr.bf16.mxu0 %v1054
    %1365 = vmatpush1.bf16.msra.mxu0 %v1053
    %1366 = vmatprep.subr.bf16.mxu0 %v1058
    %1367 = vmatpush1.bf16.msra.mxu0 %v1057
    %1368 = vmatprep.subr.bf16.mxu0 %v1062
    %1369 = vmatpush1.bf16.msra.mxu0 %v1061
    %1370 = vmatprep.subr.bf16.mxu0 %v1066
    %1371 = vmatpush1.bf16.msra.mxu0 %v1065
    %1372 = vmatprep.subr.bf16.mxu0 %v1070
    %1373 = vmatpush1.bf16.msra.mxu0 %v1069
    %1374 = vmatprep.subr.bf16.mxu0 %v1074
    %1375 = vmatpush1.bf16.msra.mxu0 %v1073
    %1376 = vmatprep.subr.bf16.mxu0 %v1078
    %1377 = vmatpush1.bf16.msra.mxu0 %v1077
    %1378 = vmatprep.subr.bf16.mxu0 %v1082
    %1379 = vmatpush1.bf16.msra.mxu0 %v1081
    %1380 = vmatprep.subr.bf16.mxu0 %v1086
    %1381 = vmatpush1.bf16.msra.mxu0 %v1085
    %1382 = vmatprep.subr.bf16.mxu0 %v1090
    %1383 = vmatpush1.bf16.msra.mxu0 %v1089
    %1384 = vmatprep.subr.bf16.mxu0 %v1094
    %1385 = vmatpush1.bf16.msra.mxu0 %v1093
    %1386 = vmatprep.subr.bf16.mxu0 %v1098
    %1387 = vmatpush1.bf16.msra.mxu0 %v1097
    %1388 = vmatprep.mubr.bf16.mxu0 %v432
    %1389 = vmatmul.mubr.bf16.gmra.mrb[0].mxu0 %v431
    %v1390 = vpop.f32.mrb[0].mxu0
    %v1391 = vadd.f32 %v1348, %v1390
    %v1392 = vpop.f32.mrb[0].mxu0
    %v1393 = vadd.f32 %v1350, %v1392
    %v1394 = vpop.f32.mrb[0].mxu0
    %v1395 = vadd.f32 %v1352, %v1394
    %v1396 = vpop.f32.mrb[0].mxu0
    %v1397 = vadd.f32 %v1354, %v1396
    %1398 = vdwg.mxu0
    %v1399 = vmax.f32 %v1305, 0.0
    %v1400 = vmax.f32 %v1307, 0.0
    %v1401 = vmax.f32 %v1391, 0.0
    %v1402 = vmax.f32 %v1393, 0.0
    %v1403 = vmax.f32 %v1309, 0.0
    %v1404 = vmax.f32 %v1311, 0.0
    %v1405 = vmax.f32 %v1395, 0.0
    %v1406 = vmax.f32 %v1397, 0.0
    %v1407 = vpack.c.bf16 %v1403, %v1399
    %v1408 = vpack.c.bf16 %v1404, %v1400
    %v1409 = vpack.c.bf16 %v1405, %v1401
    %v1410 = vpack.c.bf16 %v1406, %v1402
    %v1411 = vld [vmem:[#allocation7] sm:$0xff]
    %v1412 = vld [vmem:[#allocation7 + $0x8] sm:$0xff]
    %v1413 = vld [vmem:[#allocation7 + $0x10] sm:$0xff]
    %v1414 = vld [vmem:[#allocation7 + $0x18] sm:$0xff]
    %v1415 = vld [vmem:[#allocation7 + $0x20] sm:$0xff]
    %v1416 = vld [vmem:[#allocation7 + $0x28] sm:$0xff]
    %v1417 = vld [vmem:[#allocation7 + $0x30] sm:$0xff]
    %v1418 = vld [vmem:[#allocation7 + $0x38] sm:$0xff]
    %v1419 = vld [vmem:[#allocation7 + $0x40] sm:$0xff]
    %v1420 = vld [vmem:[#allocation7 + $0x48] sm:$0xff]
    %v1421 = vld [vmem:[#allocation7 + $0x50] sm:$0xff]
    %v1422 = vld [vmem:[#allocation7 + $0x58] sm:$0xff]
    %v1423 = vld [vmem:[#allocation7 + $0x60] sm:$0xff]
    %v1424 = vld [vmem:[#allocation7 + $0x68] sm:$0xff]
    %v1425 = vld [vmem:[#allocation7 + $0x70] sm:$0xff]
    %v1426 = vld [vmem:[#allocation7 + $0x78] sm:$0xff]
    %v1427 = vld [vmem:[#allocation7 + $0x80] sm:$0xff]
    %v1428 = vld [vmem:[#allocation7 + $0x88] sm:$0xff]
    %v1429 = vld [vmem:[#allocation7 + $0x90] sm:$0xff]
    %v1430 = vld [vmem:[#allocation7 + $0x98] sm:$0xff]
    %v1431 = vld [vmem:[#allocation7 + $0xa0] sm:$0xff]
    %v1432 = vld [vmem:[#allocation7 + $0xa8] sm:$0xff]
    %v1433 = vld [vmem:[#allocation7 + $0xb0] sm:$0xff]
    %v1434 = vld [vmem:[#allocation7 + $0xb8] sm:$0xff]
    %v1435 = vld [vmem:[#allocation7 + $0xc0] sm:$0xff]
    %v1436 = vld [vmem:[#allocation7 + $0xc8] sm:$0xff]
    %v1437 = vld [vmem:[#allocation7 + $0xd0] sm:$0xff]
    %v1438 = vld [vmem:[#allocation7 + $0xd8] sm:$0xff]
    %v1439 = vld [vmem:[#allocation7 + $0xe0] sm:$0xff]
    %v1440 = vld [vmem:[#allocation7 + $0xe8] sm:$0xff]
    %v1441 = vld [vmem:[#allocation7 + $0xf0] sm:$0xff]
    %v1442 = vld [vmem:[#allocation7 + $0xf8] sm:$0xff]
    %v1443 = vld [vmem:[#allocation7 + $0x100] sm:$0xff]
    %v1444 = vld [vmem:[#allocation7 + $0x108] sm:$0xff]
    %v1445 = vld [vmem:[#allocation7 + $0x110] sm:$0xff]
    %v1446 = vld [vmem:[#allocation7 + $0x118] sm:$0xff]
    %v1447 = vld [vmem:[#allocation7 + $0x120] sm:$0xff]
    %v1448 = vld [vmem:[#allocation7 + $0x128] sm:$0xff]
    %v1449 = vld [vmem:[#allocation7 + $0x130] sm:$0xff]
    %v1450 = vld [vmem:[#allocation7 + $0x138] sm:$0xff]
    %v1451 = vld [vmem:[#allocation7 + $0x140] sm:$0xff]
    %v1452 = vld [vmem:[#allocation7 + $0x148] sm:$0xff]
    %v1453 = vld [vmem:[#allocation7 + $0x150] sm:$0xff]
    %v1454 = vld [vmem:[#allocation7 + $0x158] sm:$0xff]
    %v1455 = vld [vmem:[#allocation7 + $0x160] sm:$0xff]
    %v1456 = vld [vmem:[#allocation7 + $0x168] sm:$0xff]
    %v1457 = vld [vmem:[#allocation7 + $0x170] sm:$0xff]
    %v1458 = vld [vmem:[#allocation7 + $0x178] sm:$0xff]
    %v1459 = vld [vmem:[#allocation7 + $0x180] sm:$0xff]
    %v1460 = vld [vmem:[#allocation7 + $0x188] sm:$0xff]
    %v1461 = vld [vmem:[#allocation7 + $0x190] sm:$0xff]
    %v1462 = vld [vmem:[#allocation7 + $0x198] sm:$0xff]
    %v1463 = vld [vmem:[#allocation7 + $0x1a0] sm:$0xff]
    %v1464 = vld [vmem:[#allocation7 + $0x1a8] sm:$0xff]
    %v1465 = vld [vmem:[#allocation7 + $0x1b0] sm:$0xff]
    %v1466 = vld [vmem:[#allocation7 + $0x1b8] sm:$0xff]
    %v1467 = vld [vmem:[#allocation7 + $0x1c0] sm:$0xff]
    %v1468 = vld [vmem:[#allocation7 + $0x1c8] sm:$0xff]
    %v1469 = vld [vmem:[#allocation7 + $0x1d0] sm:$0xff]
    %v1470 = vld [vmem:[#allocation7 + $0x1d8] sm:$0xff]
    %v1471 = vld [vmem:[#allocation7 + $0x1e0] sm:$0xff]
    %v1472 = vld [vmem:[#allocation7 + $0x1e8] sm:$0xff]
    %v1473 = vld [vmem:[#allocation7 + $0x1f0] sm:$0xff]
    %v1474 = vld [vmem:[#allocation7 + $0x1f8] sm:$0xff]
    %v1475 = vld [vmem:[#allocation7 + $0x200] sm:$0xff]
    %v1476 = vld [vmem:[#allocation7 + $0x208] sm:$0xff]
    %v1477 = vld [vmem:[#allocation7 + $0x210] sm:$0xff]
    %v1478 = vld [vmem:[#allocation7 + $0x218] sm:$0xff]
    %v1479 = vld [vmem:[#allocation7 + $0x220] sm:$0xff]
    %v1480 = vld [vmem:[#allocation7 + $0x228] sm:$0xff]
    %v1481 = vld [vmem:[#allocation7 + $0x230] sm:$0xff]
    %v1482 = vld [vmem:[#allocation7 + $0x238] sm:$0xff]
    %v1483 = vld [vmem:[#allocation7 + $0x240] sm:$0xff]
    %v1484 = vld [vmem:[#allocation7 + $0x248] sm:$0xff]
    %v1485 = vld [vmem:[#allocation7 + $0x250] sm:$0xff]
    %v1486 = vld [vmem:[#allocation7 + $0x258] sm:$0xff]
    %v1487 = vld [vmem:[#allocation7 + $0x260] sm:$0xff]
    %v1488 = vld [vmem:[#allocation7 + $0x268] sm:$0xff]
    %v1489 = vld [vmem:[#allocation7 + $0x270] sm:$0xff]
    %v1490 = vld [vmem:[#allocation7 + $0x278] sm:$0xff]
    %v1491 = vld [vmem:[#allocation7 + $0x280] sm:$0xff]
    %v1492 = vld [vmem:[#allocation7 + $0x288] sm:$0xff]
    %v1493 = vld [vmem:[#allocation7 + $0x290] sm:$0xff]
    %v1494 = vld [vmem:[#allocation7 + $0x298] sm:$0xff]
    %v1495 = vld [vmem:[#allocation7 + $0x2a0] sm:$0xff]
    %v1496 = vld [vmem:[#allocation7 + $0x2a8] sm:$0xff]
    %v1497 = vld [vmem:[#allocation7 + $0x2b0] sm:$0xff]
    %v1498 = vld [vmem:[#allocation7 + $0x2b8] sm:$0xff]
    %v1499 = vld [vmem:[#allocation7 + $0x2c0] sm:$0xff]
    %v1500 = vld [vmem:[#allocation7 + $0x2c8] sm:$0xff]
    %v1501 = vld [vmem:[#allocation7 + $0x2d0] sm:$0xff]
    %v1502 = vld [vmem:[#allocation7 + $0x2d8] sm:$0xff]
    %v1503 = vld [vmem:[#allocation7 + $0x2e0] sm:$0xff]
    %v1504 = vld [vmem:[#allocation7 + $0x2e8] sm:$0xff]
    %v1505 = vld [vmem:[#allocation7 + $0x2f0] sm:$0xff]
    %v1506 = vld [vmem:[#allocation7 + $0x2f8] sm:$0xff]
    %v1507 = vld [vmem:[#allocation7 + $0x300] sm:$0xff]
    %v1508 = vld [vmem:[#allocation7 + $0x308] sm:$0xff]
    %v1509 = vld [vmem:[#allocation7 + $0x310] sm:$0xff]
    %v1510 = vld [vmem:[#allocation7 + $0x318] sm:$0xff]
    %v1511 = vld [vmem:[#allocation7 + $0x320] sm:$0xff]
    %v1512 = vld [vmem:[#allocation7 + $0x328] sm:$0xff]
    %v1513 = vld [vmem:[#allocation7 + $0x330] sm:$0xff]
    %v1514 = vld [vmem:[#allocation7 + $0x338] sm:$0xff]
    %v1515 = vld [vmem:[#allocation7 + $0x340] sm:$0xff]
    %v1516 = vld [vmem:[#allocation7 + $0x348] sm:$0xff]
    %v1517 = vld [vmem:[#allocation7 + $0x350] sm:$0xff]
    %v1518 = vld [vmem:[#allocation7 + $0x358] sm:$0xff]
    %v1519 = vld [vmem:[#allocation7 + $0x360] sm:$0xff]
    %v1520 = vld [vmem:[#allocation7 + $0x368] sm:$0xff]
    %v1521 = vld [vmem:[#allocation7 + $0x370] sm:$0xff]
    %v1522 = vld [vmem:[#allocation7 + $0x378] sm:$0xff]
    %v1523 = vld [vmem:[#allocation7 + $0x380] sm:$0xff]
    %v1524 = vld [vmem:[#allocation7 + $0x388] sm:$0xff]
    %v1525 = vld [vmem:[#allocation7 + $0x390] sm:$0xff]
    %v1526 = vld [vmem:[#allocation7 + $0x398] sm:$0xff]
    %v1527 = vld [vmem:[#allocation7 + $0x3a0] sm:$0xff]
    %v1528 = vld [vmem:[#allocation7 + $0x3a8] sm:$0xff]
    %v1529 = vld [vmem:[#allocation7 + $0x3b0] sm:$0xff]
    %v1530 = vld [vmem:[#allocation7 + $0x3b8] sm:$0xff]
    %v1531 = vld [vmem:[#allocation7 + $0x3c0] sm:$0xff]
    %v1532 = vld [vmem:[#allocation7 + $0x3c8] sm:$0xff]
    %v1533 = vld [vmem:[#allocation7 + $0x3d0] sm:$0xff]
    %v1534 = vld [vmem:[#allocation7 + $0x3d8] sm:$0xff]
    %v1535 = vld [vmem:[#allocation7 + $0x3e0] sm:$0xff]
    %v1536 = vld [vmem:[#allocation7 + $0x3e8] sm:$0xff]
    %v1537 = vld [vmem:[#allocation7 + $0x3f0] sm:$0xff]
    %v1538 = vld [vmem:[#allocation7 + $0x3f8] sm:$0xff]
    %v1539 = vld [vmem:[%s6] sm:$0xf]
    %v1541 = vlaneseq
    %v1542 = vshrl.u32 %v1541, 7
    %v1543 = vsub.s32 0, %v1542
    %v1544 = vrot.slane %v1539, %v1543
    %v1545 = vlaneseq
    %v1546 = vshrl.u32 %v1545, 7
    %v1547 = vsub.s32 1, %v1546
    %v1548 = vrot.slane %v1539, %v1547
    %v1549 = vlaneseq
    %v1550 = vshrl.u32 %v1549, 7
    %v1551 = vsub.s32 2, %v1550
    %v1552 = vrot.slane %v1539, %v1551
    %v1553 = vlaneseq
    %v1554 = vshrl.u32 %v1553, 7
    %v1555 = vsub.s32 3, %v1554
    %v1556 = vrot.slane %v1539, %v1555
    %v1689 = vunpack.c.l.b16 %v1411
    %v1690 = vunpack.c.h.b16 %v1411
    %v1691 = vunpack.c.l.b16 %v1412
    %v1692 = vunpack.c.h.b16 %v1412
    %v1693 = vunpack.c.l.b16 %v1413
    %v1694 = vunpack.c.h.b16 %v1413
    %v1695 = vunpack.c.l.b16 %v1414
    %v1696 = vunpack.c.h.b16 %v1414
    %v1697 = vunpack.c.l.b16 %v1415
    %v1698 = vunpack.c.h.b16 %v1415
    %v1699 = vunpack.c.l.b16 %v1416
    %v1700 = vunpack.c.h.b16 %v1416
    %v1701 = vunpack.c.l.b16 %v1417
    %v1702 = vunpack.c.h.b16 %v1417
    %v1703 = vunpack.c.l.b16 %v1418
    %v1704 = vunpack.c.h.b16 %v1418
    %v1705 = vunpack.c.l.b16 %v1419
    %v1706 = vunpack.c.h.b16 %v1419
    %v1707 = vunpack.c.l.b16 %v1420
    %v1708 = vunpack.c.h.b16 %v1420
    %v1709 = vunpack.c.l.b16 %v1421
    %v1710 = vunpack.c.h.b16 %v1421
    %v1711 = vunpack.c.l.b16 %v1422
    %v1712 = vunpack.c.h.b16 %v1422
    %v1713 = vunpack.c.l.b16 %v1423
    %v1714 = vunpack.c.h.b16 %v1423
    %v1715 = vunpack.c.l.b16 %v1424
    %v1716 = vunpack.c.h.b16 %v1424
    %v1717 = vunpack.c.l.b16 %v1425
    %v1718 = vunpack.c.h.b16 %v1425
    %v1719 = vunpack.c.l.b16 %v1426
    %v1720 = vunpack.c.h.b16 %v1426
    %v1721 = vunpack.c.l.b16 %v1427
    %v1722 = vunpack.c.h.b16 %v1427
    %v1723 = vunpack.c.l.b16 %v1428
    %v1724 = vunpack.c.h.b16 %v1428
    %v1725 = vunpack.c.l.b16 %v1429
    %v1726 = vunpack.c.h.b16 %v1429
    %v1727 = vunpack.c.l.b16 %v1430
    %v1728 = vunpack.c.h.b16 %v1430
    %v1729 = vunpack.c.l.b16 %v1431
    %v1730 = vunpack.c.h.b16 %v1431
    %v1731 = vunpack.c.l.b16 %v1432
    %v1732 = vunpack.c.h.b16 %v1432
    %v1733 = vunpack.c.l.b16 %v1433
    %v1734 = vunpack.c.h.b16 %v1433
    %v1735 = vunpack.c.l.b16 %v1434
    %v1736 = vunpack.c.h.b16 %v1434
    %v1737 = vunpack.c.l.b16 %v1435
    %v1738 = vunpack.c.h.b16 %v1435
    %v1739 = vunpack.c.l.b16 %v1436
    %v1740 = vunpack.c.h.b16 %v1436
    %v1741 = vunpack.c.l.b16 %v1437
    %v1742 = vunpack.c.h.b16 %v1437
    %v1743 = vunpack.c.l.b16 %v1438
    %v1744 = vunpack.c.h.b16 %v1438
    %v1745 = vunpack.c.l.b16 %v1439
    %v1746 = vunpack.c.h.b16 %v1439
    %v1747 = vunpack.c.l.b16 %v1440
    %v1748 = vunpack.c.h.b16 %v1440
    %v1749 = vunpack.c.l.b16 %v1441
    %v1750 = vunpack.c.h.b16 %v1441
    %v1751 = vunpack.c.l.b16 %v1442
    %v1752 = vunpack.c.h.b16 %v1442
    %v1753 = vunpack.c.l.b16 %v1443
    %v1754 = vunpack.c.h.b16 %v1443
    %v1755 = vunpack.c.l.b16 %v1444
    %v1756 = vunpack.c.h.b16 %v1444
    %v1757 = vunpack.c.l.b16 %v1445
    %v1758 = vunpack.c.h.b16 %v1445
    %v1759 = vunpack.c.l.b16 %v1446
    %v1760 = vunpack.c.h.b16 %v1446
    %v1761 = vunpack.c.l.b16 %v1447
    %v1762 = vunpack.c.h.b16 %v1447
    %v1763 = vunpack.c.l.b16 %v1448
    %v1764 = vunpack.c.h.b16 %v1448
    %v1765 = vunpack.c.l.b16 %v1449
    %v1766 = vunpack.c.h.b16 %v1449
    %v1767 = vunpack.c.l.b16 %v1450
    %v1768 = vunpack.c.h.b16 %v1450
    %v1769 = vunpack.c.l.b16 %v1451
    %v1770 = vunpack.c.h.b16 %v1451
    %v1771 = vunpack.c.l.b16 %v1452
    %v1772 = vunpack.c.h.b16 %v1452
    %v1773 = vunpack.c.l.b16 %v1453
    %v1774 = vunpack.c.h.b16 %v1453
    %v1775 = vunpack.c.l.b16 %v1454
    %v1776 = vunpack.c.h.b16 %v1454
    %v1777 = vunpack.c.l.b16 %v1455
    %v1778 = vunpack.c.h.b16 %v1455
    %v1779 = vunpack.c.l.b16 %v1456
    %v1780 = vunpack.c.h.b16 %v1456
    %v1781 = vunpack.c.l.b16 %v1457
    %v1782 = vunpack.c.h.b16 %v1457
    %v1783 = vunpack.c.l.b16 %v1458
    %v1784 = vunpack.c.h.b16 %v1458
    %v1785 = vunpack.c.l.b16 %v1459
    %v1786 = vunpack.c.h.b16 %v1459
    %v1787 = vunpack.c.l.b16 %v1460
    %v1788 = vunpack.c.h.b16 %v1460
    %v1789 = vunpack.c.l.b16 %v1461
    %v1790 = vunpack.c.h.b16 %v1461
    %v1791 = vunpack.c.l.b16 %v1462
    %v1792 = vunpack.c.h.b16 %v1462
    %v1793 = vunpack.c.l.b16 %v1463
    %v1794 = vunpack.c.h.b16 %v1463
    %v1795 = vunpack.c.l.b16 %v1464
    %v1796 = vunpack.c.h.b16 %v1464
    %v1797 = vunpack.c.l.b16 %v1465
    %v1798 = vunpack.c.h.b16 %v1465
    %v1799 = vunpack.c.l.b16 %v1466
    %v1800 = vunpack.c.h.b16 %v1466
    %v1801 = vunpack.c.l.b16 %v1467
    %v1802 = vunpack.c.h.b16 %v1467
    %v1803 = vunpack.c.l.b16 %v1468
    %v1804 = vunpack.c.h.b16 %v1468
    %v1805 = vunpack.c.l.b16 %v1469
    %v1806 = vunpack.c.h.b16 %v1469
    %v1807 = vunpack.c.l.b16 %v1470
    %v1808 = vunpack.c.h.b16 %v1470
    %v1809 = vunpack.c.l.b16 %v1471
    %v1810 = vunpack.c.h.b16 %v1471
    %v1811 = vunpack.c.l.b16 %v1472
    %v1812 = vunpack.c.h.b16 %v1472
    %v1813 = vunpack.c.l.b16 %v1473
    %v1814 = vunpack.c.h.b16 %v1473
    %v1815 = vunpack.c.l.b16 %v1474
    %v1816 = vunpack.c.h.b16 %v1474
    %v1817 = vunpack.c.l.b16 %v1475
    %v1818 = vunpack.c.h.b16 %v1475
    %v1819 = vunpack.c.l.b16 %v1476
    %v1820 = vunpack.c.h.b16 %v1476
    %v1821 = vunpack.c.l.b16 %v1477
    %v1822 = vunpack.c.h.b16 %v1477
    %v1823 = vunpack.c.l.b16 %v1478
    %v1824 = vunpack.c.h.b16 %v1478
    %v1825 = vunpack.c.l.b16 %v1479
    %v1826 = vunpack.c.h.b16 %v1479
    %v1827 = vunpack.c.l.b16 %v1480
    %v1828 = vunpack.c.h.b16 %v1480
    %v1829 = vunpack.c.l.b16 %v1481
    %v1830 = vunpack.c.h.b16 %v1481
    %v1831 = vunpack.c.l.b16 %v1482
    %v1832 = vunpack.c.h.b16 %v1482
    %v1833 = vunpack.c.l.b16 %v1483
    %v1834 = vunpack.c.h.b16 %v1483
    %v1835 = vunpack.c.l.b16 %v1484
    %v1836 = vunpack.c.h.b16 %v1484
    %v1837 = vunpack.c.l.b16 %v1485
    %v1838 = vunpack.c.h.b16 %v1485
    %v1839 = vunpack.c.l.b16 %v1486
    %v1840 = vunpack.c.h.b16 %v1486
    %v1841 = vunpack.c.l.b16 %v1487
    %v1842 = vunpack.c.h.b16 %v1487
    %v1843 = vunpack.c.l.b16 %v1488
    %v1844 = vunpack.c.h.b16 %v1488
    %v1845 = vunpack.c.l.b16 %v1489
    %v1846 = vunpack.c.h.b16 %v1489
    %v1847 = vunpack.c.l.b16 %v1490
    %v1848 = vunpack.c.h.b16 %v1490
    %v1849 = vunpack.c.l.b16 %v1491
    %v1850 = vunpack.c.h.b16 %v1491
    %v1851 = vunpack.c.l.b16 %v1492
    %v1852 = vunpack.c.h.b16 %v1492
    %v1853 = vunpack.c.l.b16 %v1493
    %v1854 = vunpack.c.h.b16 %v1493
    %v1855 = vunpack.c.l.b16 %v1494
    %v1856 = vunpack.c.h.b16 %v1494
    %v1857 = vunpack.c.l.b16 %v1495
    %v1858 = vunpack.c.h.b16 %v1495
    %v1859 = vunpack.c.l.b16 %v1496
    %v1860 = vunpack.c.h.b16 %v1496
    %v1861 = vunpack.c.l.b16 %v1497
    %v1862 = vunpack.c.h.b16 %v1497
    %v1863 = vunpack.c.l.b16 %v1498
    %v1864 = vunpack.c.h.b16 %v1498
    %v1865 = vunpack.c.l.b16 %v1499
    %v1866 = vunpack.c.h.b16 %v1499
    %v1867 = vunpack.c.l.b16 %v1500
    %v1868 = vunpack.c.h.b16 %v1500
    %v1869 = vunpack.c.l.b16 %v1501
    %v1870 = vunpack.c.h.b16 %v1501
    %v1871 = vunpack.c.l.b16 %v1502
    %v1872 = vunpack.c.h.b16 %v1502
    %v1873 = vunpack.c.l.b16 %v1503
    %v1874 = vunpack.c.h.b16 %v1503
    %v1875 = vunpack.c.l.b16 %v1504
    %v1876 = vunpack.c.h.b16 %v1504
    %v1877 = vunpack.c.l.b16 %v1505
    %v1878 = vunpack.c.h.b16 %v1505
    %v1879 = vunpack.c.l.b16 %v1506
    %v1880 = vunpack.c.h.b16 %v1506
    %v1881 = vunpack.c.l.b16 %v1507
    %v1882 = vunpack.c.h.b16 %v1507
    %v1883 = vunpack.c.l.b16 %v1508
    %v1884 = vunpack.c.h.b16 %v1508
    %v1885 = vunpack.c.l.b16 %v1509
    %v1886 = vunpack.c.h.b16 %v1509
    %v1887 = vunpack.c.l.b16 %v1510
    %v1888 = vunpack.c.h.b16 %v1510
    %v1889 = vunpack.c.l.b16 %v1511
    %v1890 = vunpack.c.h.b16 %v1511
    %v1891 = vunpack.c.l.b16 %v1512
    %v1892 = vunpack.c.h.b16 %v1512
    %v1893 = vunpack.c.l.b16 %v1513
    %v1894 = vunpack.c.h.b16 %v1513
    %v1895 = vunpack.c.l.b16 %v1514
    %v1896 = vunpack.c.h.b16 %v1514
    %v1897 = vunpack.c.l.b16 %v1515
    %v1898 = vunpack.c.h.b16 %v1515
    %v1899 = vunpack.c.l.b16 %v1516
    %v1900 = vunpack.c.h.b16 %v1516
    %v1901 = vunpack.c.l.b16 %v1517
    %v1902 = vunpack.c.h.b16 %v1517
    %v1903 = vunpack.c.l.b16 %v1518
    %v1904 = vunpack.c.h.b16 %v1518
    %v1905 = vunpack.c.l.b16 %v1519
    %v1906 = vunpack.c.h.b16 %v1519
    %v1907 = vunpack.c.l.b16 %v1520
    %v1908 = vunpack.c.h.b16 %v1520
    %v1909 = vunpack.c.l.b16 %v1521
    %v1910 = vunpack.c.h.b16 %v1521
    %v1911 = vunpack.c.l.b16 %v1522
    %v1912 = vunpack.c.h.b16 %v1522
    %v1913 = vunpack.c.l.b16 %v1523
    %v1914 = vunpack.c.h.b16 %v1523
    %v1915 = vunpack.c.l.b16 %v1524
    %v1916 = vunpack.c.h.b16 %v1524
    %v1917 = vunpack.c.l.b16 %v1525
    %v1918 = vunpack.c.h.b16 %v1525
    %v1919 = vunpack.c.l.b16 %v1526
    %v1920 = vunpack.c.h.b16 %v1526
    %v1921 = vunpack.c.l.b16 %v1527
    %v1922 = vunpack.c.h.b16 %v1527
    %v1923 = vunpack.c.l.b16 %v1528
    %v1924 = vunpack.c.h.b16 %v1528
    %v1925 = vunpack.c.l.b16 %v1529
    %v1926 = vunpack.c.h.b16 %v1529
    %v1927 = vunpack.c.l.b16 %v1530
    %v1928 = vunpack.c.h.b16 %v1530
    %v1929 = vunpack.c.l.b16 %v1531
    %v1930 = vunpack.c.h.b16 %v1531
    %v1931 = vunpack.c.l.b16 %v1532
    %v1932 = vunpack.c.h.b16 %v1532
    %v1933 = vunpack.c.l.b16 %v1533
    %v1934 = vunpack.c.h.b16 %v1533
    %v1935 = vunpack.c.l.b16 %v1534
    %v1936 = vunpack.c.h.b16 %v1534
    %v1937 = vunpack.c.l.b16 %v1535
    %v1938 = vunpack.c.h.b16 %v1535
    %v1939 = vunpack.c.l.b16 %v1536
    %v1940 = vunpack.c.h.b16 %v1536
    %v1941 = vunpack.c.l.b16 %v1537
    %v1942 = vunpack.c.h.b16 %v1537
    %v1943 = vunpack.c.l.b16 %v1538
    %v1944 = vunpack.c.h.b16 %v1538
    %v1945 = vpack.c.b16 %v1693, %v1689
    %v1946 = vpack.c.b16 %v1694, %v1690
    %v1947 = vpack.c.b16 %v1695, %v1691
    %v1948 = vpack.c.b16 %v1696, %v1692
    %v1949 = vpack.c.b16 %v1701, %v1697
    %v1950 = vpack.c.b16 %v1702, %v1698
    %v1951 = vpack.c.b16 %v1703, %v1699
    %v1952 = vpack.c.b16 %v1704, %v1700
    %v1953 = vpack.c.b16 %v1709, %v1705
    %v1954 = vpack.c.b16 %v1710, %v1706
    %v1955 = vpack.c.b16 %v1711, %v1707
    %v1956 = vpack.c.b16 %v1712, %v1708
    %v1957 = vpack.c.b16 %v1717, %v1713
    %v1958 = vpack.c.b16 %v1718, %v1714
    %v1959 = vpack.c.b16 %v1719, %v1715
    %v1960 = vpack.c.b16 %v1720, %v1716
    %v1961 = vpack.c.b16 %v1725, %v1721
    %v1962 = vpack.c.b16 %v1726, %v1722
    %v1963 = vpack.c.b16 %v1727, %v1723
    %v1964 = vpack.c.b16 %v1728, %v1724
    %v1965 = vpack.c.b16 %v1733, %v1729
    %v1966 = vpack.c.b16 %v1734, %v1730
    %v1967 = vpack.c.b16 %v1735, %v1731
    %v1968 = vpack.c.b16 %v1736, %v1732
    %v1969 = vpack.c.b16 %v1741, %v1737
    %v1970 = vpack.c.b16 %v1742, %v1738
    %v1971 = vpack.c.b16 %v1743, %v1739
    %v1972 = vpack.c.b16 %v1744, %v1740
    %v1973 = vpack.c.b16 %v1749, %v1745
    %v1974 = vpack.c.b16 %v1750, %v1746
    %v1975 = vpack.c.b16 %v1751, %v1747
    %v1976 = vpack.c.b16 %v1752, %v1748
    %v1977 = vpack.c.b16 %v1757, %v1753
    %v1978 = vpack.c.b16 %v1758, %v1754
    %v1979 = vpack.c.b16 %v1759, %v1755
    %v1980 = vpack.c.b16 %v1760, %v1756
    %v1981 = vpack.c.b16 %v1765, %v1761
    %v1982 = vpack.c.b16 %v1766, %v1762
    %v1983 = vpack.c.b16 %v1767, %v1763
    %v1984 = vpack.c.b16 %v1768, %v1764
    %v1985 = vpack.c.b16 %v1773, %v1769
    %v1986 = vpack.c.b16 %v1774, %v1770
    %v1987 = vpack.c.b16 %v1775, %v1771
    %v1988 = vpack.c.b16 %v1776, %v1772
    %v1989 = vpack.c.b16 %v1781, %v1777
    %v1990 = vpack.c.b16 %v1782, %v1778
    %v1991 = vpack.c.b16 %v1783, %v1779
    %v1992 = vpack.c.b16 %v1784, %v1780
    %v1993 = vpack.c.b16 %v1789, %v1785
    %v1994 = vpack.c.b16 %v1790, %v1786
    %v1995 = vpack.c.b16 %v1791, %v1787
    %v1996 = vpack.c.b16 %v1792, %v1788
    %v1997 = vpack.c.b16 %v1797, %v1793
    %v1998 = vpack.c.b16 %v1798, %v1794
    %v1999 = vpack.c.b16 %v1799, %v1795
    %v2000 = vpack.c.b16 %v1800, %v1796
    %v2001 = vpack.c.b16 %v1805, %v1801
    %v2002 = vpack.c.b16 %v1806, %v1802
    %v2003 = vpack.c.b16 %v1807, %v1803
    %v2004 = vpack.c.b16 %v1808, %v1804
    %v2005 = vpack.c.b16 %v1813, %v1809
    %v2006 = vpack.c.b16 %v1814, %v1810
    %v2007 = vpack.c.b16 %v1815, %v1811
    %v2008 = vpack.c.b16 %v1816, %v1812
    %v2009 = vpack.c.b16 %v1821, %v1817
    %v2010 = vpack.c.b16 %v1822, %v1818
    %v2011 = vpack.c.b16 %v1823, %v1819
    %v2012 = vpack.c.b16 %v1824, %v1820
    %v2013 = vpack.c.b16 %v1829, %v1825
    %v2014 = vpack.c.b16 %v1830, %v1826
    %v2015 = vpack.c.b16 %v1831, %v1827
    %v2016 = vpack.c.b16 %v1832, %v1828
    %v2017 = vpack.c.b16 %v1837, %v1833
    %v2018 = vpack.c.b16 %v1838, %v1834
    %v2019 = vpack.c.b16 %v1839, %v1835
    %v2020 = vpack.c.b16 %v1840, %v1836
    %v2021 = vpack.c.b16 %v1845, %v1841
    %v2022 = vpack.c.b16 %v1846, %v1842
    %v2023 = vpack.c.b16 %v1847, %v1843
    %v2024 = vpack.c.b16 %v1848, %v1844
    %v2025 = vpack.c.b16 %v1853, %v1849
    %v2026 = vpack.c.b16 %v1854, %v1850
    %v2027 = vpack.c.b16 %v1855, %v1851
    %v2028 = vpack.c.b16 %v1856, %v1852
    %v2029 = vpack.c.b16 %v1861, %v1857
    %v2030 = vpack.c.b16 %v1862, %v1858
    %v2031 = vpack.c.b16 %v1863, %v1859
    %v2032 = vpack.c.b16 %v1864, %v1860
    %v2033 = vpack.c.b16 %v1869, %v1865
    %v2034 = vpack.c.b16 %v1870, %v1866
    %v2035 = vpack.c.b16 %v1871, %v1867
    %v2036 = vpack.c.b16 %v1872, %v1868
    %v2037 = vpack.c.b16 %v1877, %v1873
    %v2038 = vpack.c.b16 %v1878, %v1874
    %v2039 = vpack.c.b16 %v1879, %v1875
    %v2040 = vpack.c.b16 %v1880, %v1876
    %v2041 = vpack.c.b16 %v1885, %v1881
    %v2042 = vpack.c.b16 %v1886, %v1882
    %v2043 = vpack.c.b16 %v1887, %v1883
    %v2044 = vpack.c.b16 %v1888, %v1884
    %v2045 = vpack.c.b16 %v1893, %v1889
    %v2046 = vpack.c.b16 %v1894, %v1890
    %v2047 = vpack.c.b16 %v1895, %v1891
    %v2048 = vpack.c.b16 %v1896, %v1892
    %v2049 = vpack.c.b16 %v1901, %v1897
    %v2050 = vpack.c.b16 %v1902, %v1898
    %v2051 = vpack.c.b16 %v1903, %v1899
    %v2052 = vpack.c.b16 %v1904, %v1900
    %v2053 = vpack.c.b16 %v1909, %v1905
    %v2054 = vpack.c.b16 %v1910, %v1906
    %v2055 = vpack.c.b16 %v1911, %v1907
    %v2056 = vpack.c.b16 %v1912, %v1908
    %v2057 = vpack.c.b16 %v1917, %v1913
    %v2058 = vpack.c.b16 %v1918, %v1914
    %v2059 = vpack.c.b16 %v1919, %v1915
    %v2060 = vpack.c.b16 %v1920, %v1916
    %v2061 = vpack.c.b16 %v1925, %v1921
    %v2062 = vpack.c.b16 %v1926, %v1922
    %v2063 = vpack.c.b16 %v1927, %v1923
    %v2064 = vpack.c.b16 %v1928, %v1924
    %v2065 = vpack.c.b16 %v1933, %v1929
    %v2066 = vpack.c.b16 %v1934, %v1930
    %v2067 = vpack.c.b16 %v1935, %v1931
    %v2068 = vpack.c.b16 %v1936, %v1932
    %v2069 = vpack.c.b16 %v1941, %v1937
    %v2070 = vpack.c.b16 %v1942, %v1938
    %v2071 = vpack.c.b16 %v1943, %v1939
    %v2072 = vpack.c.b16 %v1944, %v1940
    %2201 = vmatprep.subr.bf16.mxu0 %v1946
    %2202 = vmatpush1.bf16.msra.mxu0 %v1945
    %2203 = vmatprep.subr.bf16.mxu0 %v1950
    %2204 = vmatpush1.bf16.msra.mxu0 %v1949
    %2205 = vmatprep.subr.bf16.mxu0 %v1954
    %2206 = vmatpush1.bf16.msra.mxu0 %v1953
    %2207 = vmatprep.subr.bf16.mxu0 %v1958
    %2208 = vmatpush1.bf16.msra.mxu0 %v1957
    %2209 = vmatprep.subr.bf16.mxu0 %v1962
    %2210 = vmatpush1.bf16.msra.mxu0 %v1961
    %2211 = vmatprep.subr.bf16.mxu0 %v1966
    %2212 = vmatpush1.bf16.msra.mxu0 %v1965
    %2213 = vmatprep.subr.bf16.mxu0 %v1970
    %2214 = vmatpush1.bf16.msra.mxu0 %v1969
    %2215 = vmatprep.subr.bf16.mxu0 %v1974
    %2216 = vmatpush1.bf16.msra.mxu0 %v1973
    %2217 = vmatprep.subr.bf16.mxu0 %v1978
    %2218 = vmatpush1.bf16.msra.mxu0 %v1977
    %2219 = vmatprep.subr.bf16.mxu0 %v1982
    %2220 = vmatpush1.bf16.msra.mxu0 %v1981
    %2221 = vmatprep.subr.bf16.mxu0 %v1986
    %2222 = vmatpush1.bf16.msra.mxu0 %v1985
    %2223 = vmatprep.subr.bf16.mxu0 %v1990
    %2224 = vmatpush1.bf16.msra.mxu0 %v1989
    %2225 = vmatprep.subr.bf16.mxu0 %v1994
    %2226 = vmatpush1.bf16.msra.mxu0 %v1993
    %2227 = vmatprep.subr.bf16.mxu0 %v1998
    %2228 = vmatpush1.bf16.msra.mxu0 %v1997
    %2229 = vmatprep.subr.bf16.mxu0 %v2002
    %2230 = vmatpush1.bf16.msra.mxu0 %v2001
    %2231 = vmatprep.subr.bf16.mxu0 %v2006
    %2232 = vmatpush1.bf16.msra.mxu0 %v2005
    %2233 = vmatprep.mubr.bf16.mxu0 %v1408
    %2234 = vmatmul.mubr.bf16.gmra.mrb[0].mxu0 %v1407
    %v2235 = vpop.f32.mrb[0].mxu0
    %v2236 = vadd.f32 %v1544, %v2235
    %v2237 = vpop.f32.mrb[0].mxu0
    %v2238 = vadd.f32 %v1548, %v2237
    %v2239 = vpop.f32.mrb[0].mxu0
    %v2240 = vadd.f32 %v1544, %v2239
    %v2241 = vpop.f32.mrb[0].mxu0
    %v2242 = vadd.f32 %v1548, %v2241
    %2243 = vdwg.mxu0
    %2244 = vmatprep.subr.bf16.mxu0 %v2010
    %2245 = vmatpush1.bf16.msra.mxu0 %v2009
    %2246 = vmatprep.subr.bf16.mxu0 %v2014
    %2247 = vmatpush1.bf16.msra.mxu0 %v2013
    %2248 = vmatprep.subr.bf16.mxu0 %v2018
    %2249 = vmatpush1.bf16.msra.mxu0 %v2017
    %2250 = vmatprep.subr.bf16.mxu0 %v2022
    %2251 = vmatpush1.bf16.msra.mxu0 %v2021
    %2252 = vmatprep.subr.bf16.mxu0 %v2026
    %2253 = vmatpush1.bf16.msra.mxu0 %v2025
    %2254 = vmatprep.subr.bf16.mxu0 %v2030
    %2255 = vmatpush1.bf16.msra.mxu0 %v2029
    %2256 = vmatprep.subr.bf16.mxu0 %v2034
    %2257 = vmatpush1.bf16.msra.mxu0 %v2033
    %2258 = vmatprep.subr.bf16.mxu0 %v2038
    %2259 = vmatpush1.bf16.msra.mxu0 %v2037
    %2260 = vmatprep.subr.bf16.mxu0 %v2042
    %2261 = vmatpush1.bf16.msra.mxu0 %v2041
    %2262 = vmatprep.subr.bf16.mxu0 %v2046
    %2263 = vmatpush1.bf16.msra.mxu0 %v2045
    %2264 = vmatprep.subr.bf16.mxu0 %v2050
    %2265 = vmatpush1.bf16.msra.mxu0 %v2049
    %2266 = vmatprep.subr.bf16.mxu0 %v2054
    %2267 = vmatpush1.bf16.msra.mxu0 %v2053
    %2268 = vmatprep.subr.bf16.mxu0 %v2058
    %2269 = vmatpush1.bf16.msra.mxu0 %v2057
    %2270 = vmatprep.subr.bf16.mxu0 %v2062
    %2271 = vmatpush1.bf16.msra.mxu0 %v2061
    %2272 = vmatprep.subr.bf16.mxu0 %v2066
    %2273 = vmatpush1.bf16.msra.mxu0 %v2065
    %2274 = vmatprep.subr.bf16.mxu0 %v2070
    %2275 = vmatpush1.bf16.msra.mxu0 %v2069
    %2276 = vmatprep.mubr.bf16.mxu0 %v1410
    %2277 = vmatmul.mubr.bf16.gmra.mrb[0].mxu0 %v1409
    %v2278 = vpop.f32.mrb[0].mxu0
    %v2279 = vadd.f32 %v2236, %v2278
    %v2280 = vpop.f32.mrb[0].mxu0
    %v2281 = vadd.f32 %v2238, %v2280
    %v2282 = vpop.f32.mrb[0].mxu0
    %v2283 = vadd.f32 %v2240, %v2282
    %v2284 = vpop.f32.mrb[0].mxu0
    %v2285 = vadd.f32 %v2242, %v2284
    %2286 = vdwg.mxu0
    %2287 = vmatprep.subr.bf16.mxu0 %v1948
    %2288 = vmatpush1.bf16.msra.mxu0 %v1947
    %2289 = vmatprep.subr.bf16.mxu0 %v1952
    %2290 = vmatpush1.bf16.msra.mxu0 %v1951
    %2291 = vmatprep.subr.bf16.mxu0 %v1956
    %2292 = vmatpush1.bf16.msra.mxu0 %v1955
    %2293 = vmatprep.subr.bf16.mxu0 %v1960
    %2294 = vmatpush1.bf16.msra.mxu0 %v1959
    %2295 = vmatprep.subr.bf16.mxu0 %v1964
    %2296 = vmatpush1.bf16.msra.mxu0 %v1963
    %2297 = vmatprep.subr.bf16.mxu0 %v1968
    %2298 = vmatpush1.bf16.msra.mxu0 %v1967
    %2299 = vmatprep.subr.bf16.mxu0 %v1972
    %2300 = vmatpush1.bf16.msra.mxu0 %v1971
    %2301 = vmatprep.subr.bf16.mxu0 %v1976
    %2302 = vmatpush1.bf16.msra.mxu0 %v1975
    %2303 = vmatprep.subr.bf16.mxu0 %v1980
    %2304 = vmatpush1.bf16.msra.mxu0 %v1979
    %2305 = vmatprep.subr.bf16.mxu0 %v1984
    %2306 = vmatpush1.bf16.msra.mxu0 %v1983
    %2307 = vmatprep.subr.bf16.mxu0 %v1988
    %2308 = vmatpush1.bf16.msra.mxu0 %v1987
    %2309 = vmatprep.subr.bf16.mxu0 %v1992
    %2310 = vmatpush1.bf16.msra.mxu0 %v1991
    %2311 = vmatprep.subr.bf16.mxu0 %v1996
    %2312 = vmatpush1.bf16.msra.mxu0 %v1995
    %2313 = vmatprep.subr.bf16.mxu0 %v2000
    %2314 = vmatpush1.bf16.msra.mxu0 %v1999
    %2315 = vmatprep.subr.bf16.mxu0 %v2004
    %2316 = vmatpush1.bf16.msra.mxu0 %v2003
    %2317 = vmatprep.subr.bf16.mxu0 %v2008
    %2318 = vmatpush1.bf16.msra.mxu0 %v2007
    %2319 = vmatprep.mubr.bf16.mxu0 %v1408
    %2320 = vmatmul.mubr.bf16.gmra.mrb[0].mxu0 %v1407
    %v2321 = vpop.f32.mrb[0].mxu0
    %v2322 = vadd.f32 %v1552, %v2321
    %v2323 = vpop.f32.mrb[0].mxu0
    %v2324 = vadd.f32 %v1556, %v2323
    %v2325 = vpop.f32.mrb[0].mxu0
    %v2326 = vadd.f32 %v1552, %v2325
    %v2327 = vpop.f32.mrb[0].mxu0
    %v2328 = vadd.f32 %v1556, %v2327
    %2329 = vdwg.mxu0
    %2330 = vmatprep.subr.bf16.mxu0 %v2012
    %2331 = vmatpush1.bf16.msra.mxu0 %v2011
    %2332 = vmatprep.subr.bf16.mxu0 %v2016
    %2333 = vmatpush1.bf16.msra.mxu0 %v2015
    %2334 = vmatprep.subr.bf16.mxu0 %v2020
    %2335 = vmatpush1.bf16.msra.mxu0 %v2019
    %2336 = vmatprep.subr.bf16.mxu0 %v2024
    %2337 = vmatpush1.bf16.msra.mxu0 %v2023
    %2338 = vmatprep.subr.bf16.mxu0 %v2028
    %2339 = vmatpush1.bf16.msra.mxu0 %v2027
    %2340 = vmatprep.subr.bf16.mxu0 %v2032
    %2341 = vmatpush1.bf16.msra.mxu0 %v2031
    %2342 = vmatprep.subr.bf16.mxu0 %v2036
    %2343 = vmatpush1.bf16.msra.mxu0 %v2035
    %2344 = vmatprep.subr.bf16.mxu0 %v2040
    %2345 = vmatpush1.bf16.msra.mxu0 %v2039
    %2346 = vmatprep.subr.bf16.mxu0 %v2044
    %2347 = vmatpush1.bf16.msra.mxu0 %v2043
    %2348 = vmatprep.subr.bf16.mxu0 %v2048
    %2349 = vmatpush1.bf16.msra.mxu0 %v2047
    %2350 = vmatprep.subr.bf16.mxu0 %v2052
    %2351 = vmatpush1.bf16.msra.mxu0 %v2051
    %2352 = vmatprep.subr.bf16.mxu0 %v2056
    %2353 = vmatpush1.bf16.msra.mxu0 %v2055
    %2354 = vmatprep.subr.bf16.mxu0 %v2060
    %2355 = vmatpush1.bf16.msra.mxu0 %v2059
    %2356 = vmatprep.subr.bf16.mxu0 %v2064
    %2357 = vmatpush1.bf16.msra.mxu0 %v2063
    %2358 = vmatprep.subr.bf16.mxu0 %v2068
    %2359 = vmatpush1.bf16.msra.mxu0 %v2067
    %2360 = vmatprep.subr.bf16.mxu0 %v2072
    %2361 = vmatpush1.bf16.msra.mxu0 %v2071
    %2362 = vmatprep.mubr.bf16.mxu0 %v1410
    %2363 = vmatmul.mubr.bf16.gmra.mrb[0].mxu0 %v1409
    %v2364 = vpop.f32.mrb[0].mxu0
    %v2365 = vadd.f32 %v2322, %v2364
    %v2366 = vpop.f32.mrb[0].mxu0
    %v2367 = vadd.f32 %v2324, %v2366
    %v2368 = vpop.f32.mrb[0].mxu0
    %v2369 = vadd.f32 %v2326, %v2368
    %v2370 = vpop.f32.mrb[0].mxu0
    %v2371 = vadd.f32 %v2328, %v2370
    %2372 = vdwg.mxu0
    %v2373 = vld [vmem:[#allocation8] sm:$0xff]
    %v2374 = vld [vmem:[#allocation8 + $0x8] sm:$0xff]
    %v2375 = vld [vmem:[#allocation8 + $0x10] sm:$0xff]
    %v2376 = vld [vmem:[#allocation8 + $0x18] sm:$0xff]
    %v2377 = vld [vmem:[#allocation8 + $0x20] sm:$0xff]
    %v2378 = vld [vmem:[#allocation8 + $0x28] sm:$0xff]
    %v2379 = vld [vmem:[#allocation8 + $0x30] sm:$0xff]
    %v2380 = vld [vmem:[#allocation8 + $0x38] sm:$0xff]
    %v2381 = vld [vmem:[#allocation8 + $0x40] sm:$0xff]
    %v2382 = vld [vmem:[#allocation8 + $0x48] sm:$0xff]
    %v2383 = vld [vmem:[#allocation8 + $0x50] sm:$0xff]
    %v2384 = vld [vmem:[#allocation8 + $0x58] sm:$0xff]
    %v2385 = vld [vmem:[#allocation8 + $0x60] sm:$0xff]
    %v2386 = vld [vmem:[#allocation8 + $0x68] sm:$0xff]
    %v2387 = vld [vmem:[#allocation8 + $0x70] sm:$0xff]
    %v2388 = vld [vmem:[#allocation8 + $0x78] sm:$0xff]
    %v2389 = vld [vmem:[#allocation8 + $0x80] sm:$0xff]
    %v2390 = vld [vmem:[#allocation8 + $0x88] sm:$0xff]
    %v2391 = vld [vmem:[#allocation8 + $0x90] sm:$0xff]
    %v2392 = vld [vmem:[#allocation8 + $0x98] sm:$0xff]
    %v2393 = vld [vmem:[#allocation8 + $0xa0] sm:$0xff]
    %v2394 = vld [vmem:[#allocation8 + $0xa8] sm:$0xff]
    %v2395 = vld [vmem:[#allocation8 + $0xb0] sm:$0xff]
    %v2396 = vld [vmem:[#allocation8 + $0xb8] sm:$0xff]
    %v2397 = vld [vmem:[#allocation8 + $0xc0] sm:$0xff]
    %v2398 = vld [vmem:[#allocation8 + $0xc8] sm:$0xff]
    %v2399 = vld [vmem:[#allocation8 + $0xd0] sm:$0xff]
    %v2400 = vld [vmem:[#allocation8 + $0xd8] sm:$0xff]
    %v2401 = vld [vmem:[#allocation8 + $0xe0] sm:$0xff]
    %v2402 = vld [vmem:[#allocation8 + $0xe8] sm:$0xff]
    %v2403 = vld [vmem:[#allocation8 + $0xf0] sm:$0xff]
    %v2404 = vld [vmem:[#allocation8 + $0xf8] sm:$0xff]
    %v2405 = vld [vmem:[#allocation8 + $0x100] sm:$0xff]
    %v2406 = vld [vmem:[#allocation8 + $0x108] sm:$0xff]
    %v2407 = vld [vmem:[#allocation8 + $0x110] sm:$0xff]
    %v2408 = vld [vmem:[#allocation8 + $0x118] sm:$0xff]
    %v2409 = vld [vmem:[#allocation8 + $0x120] sm:$0xff]
    %v2410 = vld [vmem:[#allocation8 + $0x128] sm:$0xff]
    %v2411 = vld [vmem:[#allocation8 + $0x130] sm:$0xff]
    %v2412 = vld [vmem:[#allocation8 + $0x138] sm:$0xff]
    %v2413 = vld [vmem:[#allocation8 + $0x140] sm:$0xff]
    %v2414 = vld [vmem:[#allocation8 + $0x148] sm:$0xff]
    %v2415 = vld [vmem:[#allocation8 + $0x150] sm:$0xff]
    %v2416 = vld [vmem:[#allocation8 + $0x158] sm:$0xff]
    %v2417 = vld [vmem:[#allocation8 + $0x160] sm:$0xff]
    %v2418 = vld [vmem:[#allocation8 + $0x168] sm:$0xff]
    %v2419 = vld [vmem:[#allocation8 + $0x170] sm:$0xff]
    %v2420 = vld [vmem:[#allocation8 + $0x178] sm:$0xff]
    %v2421 = vld [vmem:[#allocation8 + $0x180] sm:$0xff]
    %v2422 = vld [vmem:[#allocation8 + $0x188] sm:$0xff]
    %v2423 = vld [vmem:[#allocation8 + $0x190] sm:$0xff]
    %v2424 = vld [vmem:[#allocation8 + $0x198] sm:$0xff]
    %v2425 = vld [vmem:[#allocation8 + $0x1a0] sm:$0xff]
    %v2426 = vld [vmem:[#allocation8 + $0x1a8] sm:$0xff]
    %v2427 = vld [vmem:[#allocation8 + $0x1b0] sm:$0xff]
    %v2428 = vld [vmem:[#allocation8 + $0x1b8] sm:$0xff]
    %v2429 = vld [vmem:[#allocation8 + $0x1c0] sm:$0xff]
    %v2430 = vld [vmem:[#allocation8 + $0x1c8] sm:$0xff]
    %v2431 = vld [vmem:[#allocation8 + $0x1d0] sm:$0xff]
    %v2432 = vld [vmem:[#allocation8 + $0x1d8] sm:$0xff]
    %v2433 = vld [vmem:[#allocation8 + $0x1e0] sm:$0xff]
    %v2434 = vld [vmem:[#allocation8 + $0x1e8] sm:$0xff]
    %v2435 = vld [vmem:[#allocation8 + $0x1f0] sm:$0xff]
    %v2436 = vld [vmem:[#allocation8 + $0x1f8] sm:$0xff]
    %v2437 = vld [vmem:[#allocation8 + $0x200] sm:$0xff]
    %v2438 = vld [vmem:[#allocation8 + $0x208] sm:$0xff]
    %v2439 = vld [vmem:[#allocation8 + $0x210] sm:$0xff]
    %v2440 = vld [vmem:[#allocation8 + $0x218] sm:$0xff]
    %v2441 = vld [vmem:[#allocation8 + $0x220] sm:$0xff]
    %v2442 = vld [vmem:[#allocation8 + $0x228] sm:$0xff]
    %v2443 = vld [vmem:[#allocation8 + $0x230] sm:$0xff]
    %v2444 = vld [vmem:[#allocation8 + $0x238] sm:$0xff]
    %v2445 = vld [vmem:[#allocation8 + $0x240] sm:$0xff]
    %v2446 = vld [vmem:[#allocation8 + $0x248] sm:$0xff]
    %v2447 = vld [vmem:[#allocation8 + $0x250] sm:$0xff]
    %v2448 = vld [vmem:[#allocation8 + $0x258] sm:$0xff]
    %v2449 = vld [vmem:[#allocation8 + $0x260] sm:$0xff]
    %v2450 = vld [vmem:[#allocation8 + $0x268] sm:$0xff]
    %v2451 = vld [vmem:[#allocation8 + $0x270] sm:$0xff]
    %v2452 = vld [vmem:[#allocation8 + $0x278] sm:$0xff]
    %v2453 = vld [vmem:[#allocation8 + $0x280] sm:$0xff]
    %v2454 = vld [vmem:[#allocation8 + $0x288] sm:$0xff]
    %v2455 = vld [vmem:[#allocation8 + $0x290] sm:$0xff]
    %v2456 = vld [vmem:[#allocation8 + $0x298] sm:$0xff]
    %v2457 = vld [vmem:[#allocation8 + $0x2a0] sm:$0xff]
    %v2458 = vld [vmem:[#allocation8 + $0x2a8] sm:$0xff]
    %v2459 = vld [vmem:[#allocation8 + $0x2b0] sm:$0xff]
    %v2460 = vld [vmem:[#allocation8 + $0x2b8] sm:$0xff]
    %v2461 = vld [vmem:[#allocation8 + $0x2c0] sm:$0xff]
    %v2462 = vld [vmem:[#allocation8 + $0x2c8] sm:$0xff]
    %v2463 = vld [vmem:[#allocation8 + $0x2d0] sm:$0xff]
    %v2464 = vld [vmem:[#allocation8 + $0x2d8] sm:$0xff]
    %v2465 = vld [vmem:[#allocation8 + $0x2e0] sm:$0xff]
    %v2466 = vld [vmem:[#allocation8 + $0x2e8] sm:$0xff]
    %v2467 = vld [vmem:[#allocation8 + $0x2f0] sm:$0xff]
    %v2468 = vld [vmem:[#allocation8 + $0x2f8] sm:$0xff]
    %v2469 = vld [vmem:[#allocation8 + $0x300] sm:$0xff]
    %v2470 = vld [vmem:[#allocation8 + $0x308] sm:$0xff]
    %v2471 = vld [vmem:[#allocation8 + $0x310] sm:$0xff]
    %v2472 = vld [vmem:[#allocation8 + $0x318] sm:$0xff]
    %v2473 = vld [vmem:[#allocation8 + $0x320] sm:$0xff]
    %v2474 = vld [vmem:[#allocation8 + $0x328] sm:$0xff]
    %v2475 = vld [vmem:[#allocation8 + $0x330] sm:$0xff]
    %v2476 = vld [vmem:[#allocation8 + $0x338] sm:$0xff]
    %v2477 = vld [vmem:[#allocation8 + $0x340] sm:$0xff]
    %v2478 = vld [vmem:[#allocation8 + $0x348] sm:$0xff]
    %v2479 = vld [vmem:[#allocation8 + $0x350] sm:$0xff]
    %v2480 = vld [vmem:[#allocation8 + $0x358] sm:$0xff]
    %v2481 = vld [vmem:[#allocation8 + $0x360] sm:$0xff]
    %v2482 = vld [vmem:[#allocation8 + $0x368] sm:$0xff]
    %v2483 = vld [vmem:[#allocation8 + $0x370] sm:$0xff]
    %v2484 = vld [vmem:[#allocation8 + $0x378] sm:$0xff]
    %v2485 = vld [vmem:[#allocation8 + $0x380] sm:$0xff]
    %v2486 = vld [vmem:[#allocation8 + $0x388] sm:$0xff]
    %v2487 = vld [vmem:[#allocation8 + $0x390] sm:$0xff]
    %v2488 = vld [vmem:[#allocation8 + $0x398] sm:$0xff]
    %v2489 = vld [vmem:[#allocation8 + $0x3a0] sm:$0xff]
    %v2490 = vld [vmem:[#allocation8 + $0x3a8] sm:$0xff]
    %v2491 = vld [vmem:[#allocation8 + $0x3b0] sm:$0xff]
    %v2492 = vld [vmem:[#allocation8 + $0x3b8] sm:$0xff]
    %v2493 = vld [vmem:[#allocation8 + $0x3c0] sm:$0xff]
    %v2494 = vld [vmem:[#allocation8 + $0x3c8] sm:$0xff]
    %v2495 = vld [vmem:[#allocation8 + $0x3d0] sm:$0xff]
    %v2496 = vld [vmem:[#allocation8 + $0x3d8] sm:$0xff]
    %v2497 = vld [vmem:[#allocation8 + $0x3e0] sm:$0xff]
    %v2498 = vld [vmem:[#allocation8 + $0x3e8] sm:$0xff]
    %v2499 = vld [vmem:[#allocation8 + $0x3f0] sm:$0xff]
    %v2500 = vld [vmem:[#allocation8 + $0x3f8] sm:$0xff]
    %v2501 = vld [vmem:[%s8] sm:$0xf]
    %v2503 = vlaneseq
    %v2504 = vshrl.u32 %v2503, 7
    %v2505 = vsub.s32 0, %v2504
    %v2506 = vrot.slane %v2501, %v2505
    %v2507 = vlaneseq
    %v2508 = vshrl.u32 %v2507, 7
    %v2509 = vsub.s32 1, %v2508
    %v2510 = vrot.slane %v2501, %v2509
    %v2511 = vlaneseq
    %v2512 = vshrl.u32 %v2511, 7
    %v2513 = vsub.s32 2, %v2512
    %v2514 = vrot.slane %v2501, %v2513
    %v2515 = vlaneseq
    %v2516 = vshrl.u32 %v2515, 7
    %v2517 = vsub.s32 3, %v2516
    %v2518 = vrot.slane %v2501, %v2517
    %v2651 = vunpack.c.l.b16 %v2373
    %v2652 = vunpack.c.h.b16 %v2373
    %v2653 = vunpack.c.l.b16 %v2374
    %v2654 = vunpack.c.h.b16 %v2374
    %v2655 = vunpack.c.l.b16 %v2375
    %v2656 = vunpack.c.h.b16 %v2375
    %v2657 = vunpack.c.l.b16 %v2376
    %v2658 = vunpack.c.h.b16 %v2376
    %v2659 = vunpack.c.l.b16 %v2377
    %v2660 = vunpack.c.h.b16 %v2377
    %v2661 = vunpack.c.l.b16 %v2378
    %v2662 = vunpack.c.h.b16 %v2378
    %v2663 = vunpack.c.l.b16 %v2379
    %v2664 = vunpack.c.h.b16 %v2379
    %v2665 = vunpack.c.l.b16 %v2380
    %v2666 = vunpack.c.h.b16 %v2380
    %v2667 = vunpack.c.l.b16 %v2381
    %v2668 = vunpack.c.h.b16 %v2381
    %v2669 = vunpack.c.l.b16 %v2382
    %v2670 = vunpack.c.h.b16 %v2382
    %v2671 = vunpack.c.l.b16 %v2383
    %v2672 = vunpack.c.h.b16 %v2383
    %v2673 = vunpack.c.l.b16 %v2384
    %v2674 = vunpack.c.h.b16 %v2384
    %v2675 = vunpack.c.l.b16 %v2385
    %v2676 = vunpack.c.h.b16 %v2385
    %v2677 = vunpack.c.l.b16 %v2386
    %v2678 = vunpack.c.h.b16 %v2386
    %v2679 = vunpack.c.l.b16 %v2387
    %v2680 = vunpack.c.h.b16 %v2387
    %v2681 = vunpack.c.l.b16 %v2388
    %v2682 = vunpack.c.h.b16 %v2388
    %v2683 = vunpack.c.l.b16 %v2389
    %v2684 = vunpack.c.h.b16 %v2389
    %v2685 = vunpack.c.l.b16 %v2390
    %v2686 = vunpack.c.h.b16 %v2390
    %v2687 = vunpack.c.l.b16 %v2391
    %v2688 = vunpack.c.h.b16 %v2391
    %v2689 = vunpack.c.l.b16 %v2392
    %v2690 = vunpack.c.h.b16 %v2392
    %v2691 = vunpack.c.l.b16 %v2393
    %v2692 = vunpack.c.h.b16 %v2393
    %v2693 = vunpack.c.l.b16 %v2394
    %v2694 = vunpack.c.h.b16 %v2394
    %v2695 = vunpack.c.l.b16 %v2395
    %v2696 = vunpack.c.h.b16 %v2395
    %v2697 = vunpack.c.l.b16 %v2396
    %v2698 = vunpack.c.h.b16 %v2396
    %v2699 = vunpack.c.l.b16 %v2397
    %v2700 = vunpack.c.h.b16 %v2397
    %v2701 = vunpack.c.l.b16 %v2398
    %v2702 = vunpack.c.h.b16 %v2398
    %v2703 = vunpack.c.l.b16 %v2399
    %v2704 = vunpack.c.h.b16 %v2399
    %v2705 = vunpack.c.l.b16 %v2400
    %v2706 = vunpack.c.h.b16 %v2400
    %v2707 = vunpack.c.l.b16 %v2401
    %v2708 = vunpack.c.h.b16 %v2401
    %v2709 = vunpack.c.l.b16 %v2402
    %v2710 = vunpack.c.h.b16 %v2402
    %v2711 = vunpack.c.l.b16 %v2403
    %v2712 = vunpack.c.h.b16 %v2403
    %v2713 = vunpack.c.l.b16 %v2404
    %v2714 = vunpack.c.h.b16 %v2404
    %v2715 = vunpack.c.l.b16 %v2405
    %v2716 = vunpack.c.h.b16 %v2405
    %v2717 = vunpack.c.l.b16 %v2406
    %v2718 = vunpack.c.h.b16 %v2406
    %v2719 = vunpack.c.l.b16 %v2407
    %v2720 = vunpack.c.h.b16 %v2407
    %v2721 = vunpack.c.l.b16 %v2408
    %v2722 = vunpack.c.h.b16 %v2408
    %v2723 = vunpack.c.l.b16 %v2409
    %v2724 = vunpack.c.h.b16 %v2409
    %v2725 = vunpack.c.l.b16 %v2410
    %v2726 = vunpack.c.h.b16 %v2410
    %v2727 = vunpack.c.l.b16 %v2411
    %v2728 = vunpack.c.h.b16 %v2411
    %v2729 = vunpack.c.l.b16 %v2412
    %v2730 = vunpack.c.h.b16 %v2412
    %v2731 = vunpack.c.l.b16 %v2413
    %v2732 = vunpack.c.h.b16 %v2413
    %v2733 = vunpack.c.l.b16 %v2414
    %v2734 = vunpack.c.h.b16 %v2414
    %v2735 = vunpack.c.l.b16 %v2415
    %v2736 = vunpack.c.h.b16 %v2415
    %v2737 = vunpack.c.l.b16 %v2416
    %v2738 = vunpack.c.h.b16 %v2416
    %v2739 = vunpack.c.l.b16 %v2417
    %v2740 = vunpack.c.h.b16 %v2417
    %v2741 = vunpack.c.l.b16 %v2418
    %v2742 = vunpack.c.h.b16 %v2418
    %v2743 = vunpack.c.l.b16 %v2419
    %v2744 = vunpack.c.h.b16 %v2419
    %v2745 = vunpack.c.l.b16 %v2420
    %v2746 = vunpack.c.h.b16 %v2420
    %v2747 = vunpack.c.l.b16 %v2421
    %v2748 = vunpack.c.h.b16 %v2421
    %v2749 = vunpack.c.l.b16 %v2422
    %v2750 = vunpack.c.h.b16 %v2422
    %v2751 = vunpack.c.l.b16 %v2423
    %v2752 = vunpack.c.h.b16 %v2423
    %v2753 = vunpack.c.l.b16 %v2424
    %v2754 = vunpack.c.h.b16 %v2424
    %v2755 = vunpack.c.l.b16 %v2425
    %v2756 = vunpack.c.h.b16 %v2425
    %v2757 = vunpack.c.l.b16 %v2426
    %v2758 = vunpack.c.h.b16 %v2426
    %v2759 = vunpack.c.l.b16 %v2427
    %v2760 = vunpack.c.h.b16 %v2427
    %v2761 = vunpack.c.l.b16 %v2428
    %v2762 = vunpack.c.h.b16 %v2428
    %v2763 = vunpack.c.l.b16 %v2429
    %v2764 = vunpack.c.h.b16 %v2429
    %v2765 = vunpack.c.l.b16 %v2430
    %v2766 = vunpack.c.h.b16 %v2430
    %v2767 = vunpack.c.l.b16 %v2431
    %v2768 = vunpack.c.h.b16 %v2431
    %v2769 = vunpack.c.l.b16 %v2432
    %v2770 = vunpack.c.h.b16 %v2432
    %v2771 = vunpack.c.l.b16 %v2433
    %v2772 = vunpack.c.h.b16 %v2433
    %v2773 = vunpack.c.l.b16 %v2434
    %v2774 = vunpack.c.h.b16 %v2434
    %v2775 = vunpack.c.l.b16 %v2435
    %v2776 = vunpack.c.h.b16 %v2435
    %v2777 = vunpack.c.l.b16 %v2436
    %v2778 = vunpack.c.h.b16 %v2436
    %v2779 = vunpack.c.l.b16 %v2437
    %v2780 = vunpack.c.h.b16 %v2437
    %v2781 = vunpack.c.l.b16 %v2438
    %v2782 = vunpack.c.h.b16 %v2438
    %v2783 = vunpack.c.l.b16 %v2439
    %v2784 = vunpack.c.h.b16 %v2439
    %v2785 = vunpack.c.l.b16 %v2440
    %v2786 = vunpack.c.h.b16 %v2440
    %v2787 = vunpack.c.l.b16 %v2441
    %v2788 = vunpack.c.h.b16 %v2441
    %v2789 = vunpack.c.l.b16 %v2442
    %v2790 = vunpack.c.h.b16 %v2442
    %v2791 = vunpack.c.l.b16 %v2443
    %v2792 = vunpack.c.h.b16 %v2443
    %v2793 = vunpack.c.l.b16 %v2444
    %v2794 = vunpack.c.h.b16 %v2444
    %v2795 = vunpack.c.l.b16 %v2445
    %v2796 = vunpack.c.h.b16 %v2445
    %v2797 = vunpack.c.l.b16 %v2446
    %v2798 = vunpack.c.h.b16 %v2446
    %v2799 = vunpack.c.l.b16 %v2447
    %v2800 = vunpack.c.h.b16 %v2447
    %v2801 = vunpack.c.l.b16 %v2448
    %v2802 = vunpack.c.h.b16 %v2448
    %v2803 = vunpack.c.l.b16 %v2449
    %v2804 = vunpack.c.h.b16 %v2449
    %v2805 = vunpack.c.l.b16 %v2450
    %v2806 = vunpack.c.h.b16 %v2450
    %v2807 = vunpack.c.l.b16 %v2451
    %v2808 = vunpack.c.h.b16 %v2451
    %v2809 = vunpack.c.l.b16 %v2452
    %v2810 = vunpack.c.h.b16 %v2452
    %v2811 = vunpack.c.l.b16 %v2453
    %v2812 = vunpack.c.h.b16 %v2453
    %v2813 = vunpack.c.l.b16 %v2454
    %v2814 = vunpack.c.h.b16 %v2454
    %v2815 = vunpack.c.l.b16 %v2455
    %v2816 = vunpack.c.h.b16 %v2455
    %v2817 = vunpack.c.l.b16 %v2456
    %v2818 = vunpack.c.h.b16 %v2456
    %v2819 = vunpack.c.l.b16 %v2457
    %v2820 = vunpack.c.h.b16 %v2457
    %v2821 = vunpack.c.l.b16 %v2458
    %v2822 = vunpack.c.h.b16 %v2458
    %v2823 = vunpack.c.l.b16 %v2459
    %v2824 = vunpack.c.h.b16 %v2459
    %v2825 = vunpack.c.l.b16 %v2460
    %v2826 = vunpack.c.h.b16 %v2460
    %v2827 = vunpack.c.l.b16 %v2461
    %v2828 = vunpack.c.h.b16 %v2461
    %v2829 = vunpack.c.l.b16 %v2462
    %v2830 = vunpack.c.h.b16 %v2462
    %v2831 = vunpack.c.l.b16 %v2463
    %v2832 = vunpack.c.h.b16 %v2463
    %v2833 = vunpack.c.l.b16 %v2464
    %v2834 = vunpack.c.h.b16 %v2464
    %v2835 = vunpack.c.l.b16 %v2465
    %v2836 = vunpack.c.h.b16 %v2465
    %v2837 = vunpack.c.l.b16 %v2466
    %v2838 = vunpack.c.h.b16 %v2466
    %v2839 = vunpack.c.l.b16 %v2467
    %v2840 = vunpack.c.h.b16 %v2467
    %v2841 = vunpack.c.l.b16 %v2468
    %v2842 = vunpack.c.h.b16 %v2468
    %v2843 = vunpack.c.l.b16 %v2469
    %v2844 = vunpack.c.h.b16 %v2469
    %v2845 = vunpack.c.l.b16 %v2470
    %v2846 = vunpack.c.h.b16 %v2470
    %v2847 = vunpack.c.l.b16 %v2471
    %v2848 = vunpack.c.h.b16 %v2471
    %v2849 = vunpack.c.l.b16 %v2472
    %v2850 = vunpack.c.h.b16 %v2472
    %v2851 = vunpack.c.l.b16 %v2473
    %v2852 = vunpack.c.h.b16 %v2473
    %v2853 = vunpack.c.l.b16 %v2474
    %v2854 = vunpack.c.h.b16 %v2474
    %v2855 = vunpack.c.l.b16 %v2475
    %v2856 = vunpack.c.h.b16 %v2475
    %v2857 = vunpack.c.l.b16 %v2476
    %v2858 = vunpack.c.h.b16 %v2476
    %v2859 = vunpack.c.l.b16 %v2477
    %v2860 = vunpack.c.h.b16 %v2477
    %v2861 = vunpack.c.l.b16 %v2478
    %v2862 = vunpack.c.h.b16 %v2478
    %v2863 = vunpack.c.l.b16 %v2479
    %v2864 = vunpack.c.h.b16 %v2479
    %v2865 = vunpack.c.l.b16 %v2480
    %v2866 = vunpack.c.h.b16 %v2480
    %v2867 = vunpack.c.l.b16 %v2481
    %v2868 = vunpack.c.h.b16 %v2481
    %v2869 = vunpack.c.l.b16 %v2482
    %v2870 = vunpack.c.h.b16 %v2482
    %v2871 = vunpack.c.l.b16 %v2483
    %v2872 = vunpack.c.h.b16 %v2483
    %v2873 = vunpack.c.l.b16 %v2484
    %v2874 = vunpack.c.h.b16 %v2484
    %v2875 = vunpack.c.l.b16 %v2485
    %v2876 = vunpack.c.h.b16 %v2485
    %v2877 = vunpack.c.l.b16 %v2486
    %v2878 = vunpack.c.h.b16 %v2486
    %v2879 = vunpack.c.l.b16 %v2487
    %v2880 = vunpack.c.h.b16 %v2487
    %v2881 = vunpack.c.l.b16 %v2488
    %v2882 = vunpack.c.h.b16 %v2488
    %v2883 = vunpack.c.l.b16 %v2489
    %v2884 = vunpack.c.h.b16 %v2489
    %v2885 = vunpack.c.l.b16 %v2490
    %v2886 = vunpack.c.h.b16 %v2490
    %v2887 = vunpack.c.l.b16 %v2491
    %v2888 = vunpack.c.h.b16 %v2491
    %v2889 = vunpack.c.l.b16 %v2492
    %v2890 = vunpack.c.h.b16 %v2492
    %v2891 = vunpack.c.l.b16 %v2493
    %v2892 = vunpack.c.h.b16 %v2493
    %v2893 = vunpack.c.l.b16 %v2494
    %v2894 = vunpack.c.h.b16 %v2494
    %v2895 = vunpack.c.l.b16 %v2495
    %v2896 = vunpack.c.h.b16 %v2495
    %v2897 = vunpack.c.l.b16 %v2496
    %v2898 = vunpack.c.h.b16 %v2496
    %v2899 = vunpack.c.l.b16 %v2497
    %v2900 = vunpack.c.h.b16 %v2497
    %v2901 = vunpack.c.l.b16 %v2498
    %v2902 = vunpack.c.h.b16 %v2498
    %v2903 = vunpack.c.l.b16 %v2499
    %v2904 = vunpack.c.h.b16 %v2499
    %v2905 = vunpack.c.l.b16 %v2500
    %v2906 = vunpack.c.h.b16 %v2500
    %v2907 = vpack.c.b16 %v2655, %v2651
    %v2908 = vpack.c.b16 %v2656, %v2652
    %v2909 = vpack.c.b16 %v2657, %v2653
    %v2910 = vpack.c.b16 %v2658, %v2654
    %v2911 = vpack.c.b16 %v2663, %v2659
    %v2912 = vpack.c.b16 %v2664, %v2660
    %v2913 = vpack.c.b16 %v2665, %v2661
    %v2914 = vpack.c.b16 %v2666, %v2662
    %v2915 = vpack.c.b16 %v2671, %v2667
    %v2916 = vpack.c.b16 %v2672, %v2668
    %v2917 = vpack.c.b16 %v2673, %v2669
    %v2918 = vpack.c.b16 %v2674, %v2670
    %v2919 = vpack.c.b16 %v2679, %v2675
    %v2920 = vpack.c.b16 %v2680, %v2676
    %v2921 = vpack.c.b16 %v2681, %v2677
    %v2922 = vpack.c.b16 %v2682, %v2678
    %v2923 = vpack.c.b16 %v2687, %v2683
    %v2924 = vpack.c.b16 %v2688, %v2684
    %v2925 = vpack.c.b16 %v2689, %v2685
    %v2926 = vpack.c.b16 %v2690, %v2686
    %v2927 = vpack.c.b16 %v2695, %v2691
    %v2928 = vpack.c.b16 %v2696, %v2692
    %v2929 = vpack.c.b16 %v2697, %v2693
    %v2930 = vpack.c.b16 %v2698, %v2694
    %v2931 = vpack.c.b16 %v2703, %v2699
    %v2932 = vpack.c.b16 %v2704, %v2700
    %v2933 = vpack.c.b16 %v2705, %v2701
    %v2934 = vpack.c.b16 %v2706, %v2702
    %v2935 = vpack.c.b16 %v2711, %v2707
    %v2936 = vpack.c.b16 %v2712, %v2708
    %v2937 = vpack.c.b16 %v2713, %v2709
    %v2938 = vpack.c.b16 %v2714, %v2710
    %v2939 = vpack.c.b16 %v2719, %v2715
    %v2940 = vpack.c.b16 %v2720, %v2716
    %v2941 = vpack.c.b16 %v2721, %v2717
    %v2942 = vpack.c.b16 %v2722, %v2718
    %v2943 = vpack.c.b16 %v2727, %v2723
    %v2944 = vpack.c.b16 %v2728, %v2724
    %v2945 = vpack.c.b16 %v2729, %v2725
    %v2946 = vpack.c.b16 %v2730, %v2726
    %v2947 = vpack.c.b16 %v2735, %v2731
    %v2948 = vpack.c.b16 %v2736, %v2732
    %v2949 = vpack.c.b16 %v2737, %v2733
    %v2950 = vpack.c.b16 %v2738, %v2734
    %v2951 = vpack.c.b16 %v2743, %v2739
    %v2952 = vpack.c.b16 %v2744, %v2740
    %v2953 = vpack.c.b16 %v2745, %v2741
    %v2954 = vpack.c.b16 %v2746, %v2742
    %v2955 = vpack.c.b16 %v2751, %v2747
    %v2956 = vpack.c.b16 %v2752, %v2748
    %v2957 = vpack.c.b16 %v2753, %v2749
    %v2958 = vpack.c.b16 %v2754, %v2750
    %v2959 = vpack.c.b16 %v2759, %v2755
    %v2960 = vpack.c.b16 %v2760, %v2756
    %v2961 = vpack.c.b16 %v2761, %v2757
    %v2962 = vpack.c.b16 %v2762, %v2758
    %v2963 = vpack.c.b16 %v2767, %v2763
    %v2964 = vpack.c.b16 %v2768, %v2764
    %v2965 = vpack.c.b16 %v2769, %v2765
    %v2966 = vpack.c.b16 %v2770, %v2766
    %v2967 = vpack.c.b16 %v2775, %v2771
    %v2968 = vpack.c.b16 %v2776, %v2772
    %v2969 = vpack.c.b16 %v2777, %v2773
    %v2970 = vpack.c.b16 %v2778, %v2774
    %v2971 = vpack.c.b16 %v2783, %v2779
    %v2972 = vpack.c.b16 %v2784, %v2780
    %v2973 = vpack.c.b16 %v2785, %v2781
    %v2974 = vpack.c.b16 %v2786, %v2782
    %v2975 = vpack.c.b16 %v2791, %v2787
    %v2976 = vpack.c.b16 %v2792, %v2788
    %v2977 = vpack.c.b16 %v2793, %v2789
    %v2978 = vpack.c.b16 %v2794, %v2790
    %v2979 = vpack.c.b16 %v2799, %v2795
    %v2980 = vpack.c.b16 %v2800, %v2796
    %v2981 = vpack.c.b16 %v2801, %v2797
    %v2982 = vpack.c.b16 %v2802, %v2798
    %v2983 = vpack.c.b16 %v2807, %v2803
    %v2984 = vpack.c.b16 %v2808, %v2804
    %v2985 = vpack.c.b16 %v2809, %v2805
    %v2986 = vpack.c.b16 %v2810, %v2806
    %v2987 = vpack.c.b16 %v2815, %v2811
    %v2988 = vpack.c.b16 %v2816, %v2812
    %v2989 = vpack.c.b16 %v2817, %v2813
    %v2990 = vpack.c.b16 %v2818, %v2814
    %v2991 = vpack.c.b16 %v2823, %v2819
    %v2992 = vpack.c.b16 %v2824, %v2820
    %v2993 = vpack.c.b16 %v2825, %v2821
    %v2994 = vpack.c.b16 %v2826, %v2822
    %v2995 = vpack.c.b16 %v2831, %v2827
    %v2996 = vpack.c.b16 %v2832, %v2828
    %v2997 = vpack.c.b16 %v2833, %v2829
    %v2998 = vpack.c.b16 %v2834, %v2830
    %v2999 = vpack.c.b16 %v2839, %v2835
    %v3000 = vpack.c.b16 %v2840, %v2836
    %v3001 = vpack.c.b16 %v2841, %v2837
    %v3002 = vpack.c.b16 %v2842, %v2838
    %v3003 = vpack.c.b16 %v2847, %v2843
    %v3004 = vpack.c.b16 %v2848, %v2844
    %v3005 = vpack.c.b16 %v2849, %v2845
    %v3006 = vpack.c.b16 %v2850, %v2846
    %v3007 = vpack.c.b16 %v2855, %v2851
    %v3008 = vpack.c.b16 %v2856, %v2852
    %v3009 = vpack.c.b16 %v2857, %v2853
    %v3010 = vpack.c.b16 %v2858, %v2854
    %v3011 = vpack.c.b16 %v2863, %v2859
    %v3012 = vpack.c.b16 %v2864, %v2860
    %v3013 = vpack.c.b16 %v2865, %v2861
    %v3014 = vpack.c.b16 %v2866, %v2862
    %v3015 = vpack.c.b16 %v2871, %v2867
    %v3016 = vpack.c.b16 %v2872, %v2868
    %v3017 = vpack.c.b16 %v2873, %v2869
    %v3018 = vpack.c.b16 %v2874, %v2870
    %v3019 = vpack.c.b16 %v2879, %v2875
    %v3020 = vpack.c.b16 %v2880, %v2876
    %v3021 = vpack.c.b16 %v2881, %v2877
    %v3022 = vpack.c.b16 %v2882, %v2878
    %v3023 = vpack.c.b16 %v2887, %v2883
    %v3024 = vpack.c.b16 %v2888, %v2884
    %v3025 = vpack.c.b16 %v2889, %v2885
    %v3026 = vpack.c.b16 %v2890, %v2886
    %v3027 = vpack.c.b16 %v2895, %v2891
    %v3028 = vpack.c.b16 %v2896, %v2892
    %v3029 = vpack.c.b16 %v2897, %v2893
    %v3030 = vpack.c.b16 %v2898, %v2894
    %v3031 = vpack.c.b16 %v2903, %v2899
    %v3032 = vpack.c.b16 %v2904, %v2900
    %v3033 = vpack.c.b16 %v2905, %v2901
    %v3034 = vpack.c.b16 %v2906, %v2902
    %3163 = vmatprep.subr.bf16.mxu0 %v2908
    %3164 = vmatpush1.bf16.msra.mxu0 %v2907
    %3165 = vmatprep.subr.bf16.mxu0 %v2912
    %3166 = vmatpush1.bf16.msra.mxu0 %v2911
    %3167 = vmatprep.subr.bf16.mxu0 %v2916
    %3168 = vmatpush1.bf16.msra.mxu0 %v2915
    %3169 = vmatprep.subr.bf16.mxu0 %v2920
    %3170 = vmatpush1.bf16.msra.mxu0 %v2919
    %3171 = vmatprep.subr.bf16.mxu0 %v2924
    %3172 = vmatpush1.bf16.msra.mxu0 %v2923
    %3173 = vmatprep.subr.bf16.mxu0 %v2928
    %3174 = vmatpush1.bf16.msra.mxu0 %v2927
    %3175 = vmatprep.subr.bf16.mxu0 %v2932
    %3176 = vmatpush1.bf16.msra.mxu0 %v2931
    %3177 = vmatprep.subr.bf16.mxu0 %v2936
    %3178 = vmatpush1.bf16.msra.mxu0 %v2935
    %3179 = vmatprep.subr.bf16.mxu0 %v2940
    %3180 = vmatpush1.bf16.msra.mxu0 %v2939
    %3181 = vmatprep.subr.bf16.mxu0 %v2944
    %3182 = vmatpush1.bf16.msra.mxu0 %v2943
    %3183 = vmatprep.subr.bf16.mxu0 %v2948
    %3184 = vmatpush1.bf16.msra.mxu0 %v2947
    %3185 = vmatprep.subr.bf16.mxu0 %v2952
    %3186 = vmatpush1.bf16.msra.mxu0 %v2951
    %3187 = vmatprep.subr.bf16.mxu0 %v2956
    %3188 = vmatpush1.bf16.msra.mxu0 %v2955
    %3189 = vmatprep.subr.bf16.mxu0 %v2960
    %3190 = vmatpush1.bf16.msra.mxu0 %v2959
    %3191 = vmatprep.subr.bf16.mxu0 %v2964
    %3192 = vmatpush1.bf16.msra.mxu0 %v2963
    %3193 = vmatprep.subr.bf16.mxu0 %v2968
    %3194 = vmatpush1.bf16.msra.mxu0 %v2967
    %3195 = vmatprep.mubr.bf16.mxu0 %v434
    %3196 = vmatmul.mubr.bf16.gmra.mrb[0].mxu0 %v433
    %v3197 = vpop.f32.mrb[0].mxu0
    %v3198 = vadd.f32 %v2506, %v3197
    %v3199 = vpop.f32.mrb[0].mxu0
    %v3200 = vadd.f32 %v2510, %v3199
    %v3201 = vpop.f32.mrb[0].mxu0
    %v3202 = vadd.f32 %v2506, %v3201
    %v3203 = vpop.f32.mrb[0].mxu0
    %v3204 = vadd.f32 %v2510, %v3203
    %3205 = vdwg.mxu0
    %3206 = vmatprep.subr.bf16.mxu0 %v2972
    %3207 = vmatpush1.bf16.msra.mxu0 %v2971
    %3208 = vmatprep.subr.bf16.mxu0 %v2976
    %3209 = vmatpush1.bf16.msra.mxu0 %v2975
    %3210 = vmatprep.subr.bf16.mxu0 %v2980
    %3211 = vmatpush1.bf16.msra.mxu0 %v2979
    %3212 = vmatprep.subr.bf16.mxu0 %v2984
    %3213 = vmatpush1.bf16.msra.mxu0 %v2983
    %3214 = vmatprep.subr.bf16.mxu0 %v2988
    %3215 = vmatpush1.bf16.msra.mxu0 %v2987
    %3216 = vmatprep.subr.bf16.mxu0 %v2992
    %3217 = vmatpush1.bf16.msra.mxu0 %v2991
    %3218 = vmatprep.subr.bf16.mxu0 %v2996
    %3219 = vmatpush1.bf16.msra.mxu0 %v2995
    %3220 = vmatprep.subr.bf16.mxu0 %v3000
    %3221 = vmatpush1.bf16.msra.mxu0 %v2999
    %3222 = vmatprep.subr.bf16.mxu0 %v3004
    %3223 = vmatpush1.bf16.msra.mxu0 %v3003
    %3224 = vmatprep.subr.bf16.mxu0 %v3008
    %3225 = vmatpush1.bf16.msra.mxu0 %v3007
    %3226 = vmatprep.subr.bf16.mxu0 %v3012
    %3227 = vmatpush1.bf16.msra.mxu0 %v3011
    %3228 = vmatprep.subr.bf16.mxu0 %v3016
    %3229 = vmatpush1.bf16.msra.mxu0 %v3015
    %3230 = vmatprep.subr.bf16.mxu0 %v3020
    %3231 = vmatpush1.bf16.msra.mxu0 %v3019
    %3232 = vmatprep.subr.bf16.mxu0 %v3024
    %3233 = vmatpush1.bf16.msra.mxu0 %v3023
    %3234 = vmatprep.subr.bf16.mxu0 %v3028
    %3235 = vmatpush1.bf16.msra.mxu0 %v3027
    %3236 = vmatprep.subr.bf16.mxu0 %v3032
    %3237 = vmatpush1.bf16.msra.mxu0 %v3031
    %3238 = vmatprep.mubr.bf16.mxu0 %v436
    %3239 = vmatmul.mubr.bf16.gmra.mrb[0].mxu0 %v435
    %v3240 = vpop.f32.mrb[0].mxu0
    %v3241 = vadd.f32 %v3198, %v3240
    %v3242 = vpop.f32.mrb[0].mxu0
    %v3243 = vadd.f32 %v3200, %v3242
    %v3244 = vpop.f32.mrb[0].mxu0
    %v3245 = vadd.f32 %v3202, %v3244
    %v3246 = vpop.f32.mrb[0].mxu0
    %v3247 = vadd.f32 %v3204, %v3246
    %3248 = vdwg.mxu0
    %3249 = vmatprep.subr.bf16.mxu0 %v2910
    %3250 = vmatpush1.bf16.msra.mxu0 %v2909
    %3251 = vmatprep.subr.bf16.mxu0 %v2914
    %3252 = vmatpush1.bf16.msra.mxu0 %v2913
    %3253 = vmatprep.subr.bf16.mxu0 %v2918
    %3254 = vmatpush1.bf16.msra.mxu0 %v2917
    %3255 = vmatprep.subr.bf16.mxu0 %v2922
    %3256 = vmatpush1.bf16.msra.mxu0 %v2921
    %3257 = vmatprep.subr.bf16.mxu0 %v2926
    %3258 = vmatpush1.bf16.msra.mxu0 %v2925
    %3259 = vmatprep.subr.bf16.mxu0 %v2930
    %3260 = vmatpush1.bf16.msra.mxu0 %v2929
    %3261 = vmatprep.subr.bf16.mxu0 %v2934
    %3262 = vmatpush1.bf16.msra.mxu0 %v2933
    %3263 = vmatprep.subr.bf16.mxu0 %v2938
    %3264 = vmatpush1.bf16.msra.mxu0 %v2937
    %3265 = vmatprep.subr.bf16.mxu0 %v2942
    %3266 = vmatpush1.bf16.msra.mxu0 %v2941
    %3267 = vmatprep.subr.bf16.mxu0 %v2946
    %3268 = vmatpush1.bf16.msra.mxu0 %v2945
    %3269 = vmatprep.subr.bf16.mxu0 %v2950
    %3270 = vmatpush1.bf16.msra.mxu0 %v2949
    %3271 = vmatprep.subr.bf16.mxu0 %v2954
    %3272 = vmatpush1.bf16.msra.mxu0 %v2953
    %3273 = vmatprep.subr.bf16.mxu0 %v2958
    %3274 = vmatpush1.bf16.msra.mxu0 %v2957
    %3275 = vmatprep.subr.bf16.mxu0 %v2962
    %3276 = vmatpush1.bf16.msra.mxu0 %v2961
    %3277 = vmatprep.subr.bf16.mxu0 %v2966
    %3278 = vmatpush1.bf16.msra.mxu0 %v2965
    %3279 = vmatprep.subr.bf16.mxu0 %v2970
    %3280 = vmatpush1.bf16.msra.mxu0 %v2969
    %3281 = vmatprep.mubr.bf16.mxu0 %v434
    %3282 = vmatmul.mubr.bf16.gmra.mrb[0].mxu0 %v433
    %v3283 = vpop.f32.mrb[0].mxu0
    %v3284 = vadd.f32 %v2514, %v3283
    %v3285 = vpop.f32.mrb[0].mxu0
    %v3286 = vadd.f32 %v2518, %v3285
    %v3287 = vpop.f32.mrb[0].mxu0
    %v3288 = vadd.f32 %v2514, %v3287
    %v3289 = vpop.f32.mrb[0].mxu0
    %v3290 = vadd.f32 %v2518, %v3289
    %3291 = vdwg.mxu0
    %3292 = vmatprep.subr.bf16.mxu0 %v2974
    %3293 = vmatpush1.bf16.msra.mxu0 %v2973
    %3294 = vmatprep.subr.bf16.mxu0 %v2978
    %3295 = vmatpush1.bf16.msra.mxu0 %v2977
    %3296 = vmatprep.subr.bf16.mxu0 %v2982
    %3297 = vmatpush1.bf16.msra.mxu0 %v2981
    %3298 = vmatprep.subr.bf16.mxu0 %v2986
    %3299 = vmatpush1.bf16.msra.mxu0 %v2985
    %3300 = vmatprep.subr.bf16.mxu0 %v2990
    %3301 = vmatpush1.bf16.msra.mxu0 %v2989
    %3302 = vmatprep.subr.bf16.mxu0 %v2994
    %3303 = vmatpush1.bf16.msra.mxu0 %v2993
    %3304 = vmatprep.subr.bf16.mxu0 %v2998
    %3305 = vmatpush1.bf16.msra.mxu0 %v2997
    %3306 = vmatprep.subr.bf16.mxu0 %v3002
    %3307 = vmatpush1.bf16.msra.mxu0 %v3001
    %3308 = vmatprep.subr.bf16.mxu0 %v3006
    %3309 = vmatpush1.bf16.msra.mxu0 %v3005
    %3310 = vmatprep.subr.bf16.mxu0 %v3010
    %3311 = vmatpush1.bf16.msra.mxu0 %v3009
    %3312 = vmatprep.subr.bf16.mxu0 %v3014
    %3313 = vmatpush1.bf16.msra.mxu0 %v3013
    %3314 = vmatprep.subr.bf16.mxu0 %v3018
    %3315 = vmatpush1.bf16.msra.mxu0 %v3017
    %3316 = vmatprep.subr.bf16.mxu0 %v3022
    %3317 = vmatpush1.bf16.msra.mxu0 %v3021
    %3318 = vmatprep.subr.bf16.mxu0 %v3026
    %3319 = vmatpush1.bf16.msra.mxu0 %v3025
    %3320 = vmatprep.subr.bf16.mxu0 %v3030
    %3321 = vmatpush1.bf16.msra.mxu0 %v3029
    %3322 = vmatprep.subr.bf16.mxu0 %v3034
    %3323 = vmatpush1.bf16.msra.mxu0 %v3033
    %3324 = vmatprep.mubr.bf16.mxu0 %v436
    %3325 = vmatmul.mubr.bf16.gmra.mrb[0].mxu0 %v435
    %v3326 = vpop.f32.mrb[0].mxu0
    %v3327 = vadd.f32 %v3284, %v3326
    %v3328 = vpop.f32.mrb[0].mxu0
    %v3329 = vadd.f32 %v3286, %v3328
    %v3330 = vpop.f32.mrb[0].mxu0
    %v3331 = vadd.f32 %v3288, %v3330
    %v3332 = vpop.f32.mrb[0].mxu0
    %v3333 = vadd.f32 %v3290, %v3332
    %3334 = vdwg.mxu0
    %v3335 = vpack.c.bf16 %v2283, %v2279
    %v3336 = vpack.c.bf16 %v2285, %v2281
    %v3337 = vpack.c.bf16 %v2369, %v2365
    %v3338 = vpack.c.bf16 %v2371, %v2367
    %v3343 = vunpack.c.l.b16 %v3335
    %v3344 = vunpack.c.l.b16 %v3336
    %v3345 = vunpack.c.l.b16 %v3337
    %v3346 = vunpack.c.l.b16 %v3338
    %v3347 = vunpack.c.h.b16 %v3335
    %v3348 = vunpack.c.h.b16 %v3336
    %v3349 = vunpack.c.h.b16 %v3337
    %v3350 = vunpack.c.h.b16 %v3338
    %v3351 = vpack.c.b16 %v3344, %v3343
    %v3352 = vpack.c.b16 %v3346, %v3345
    %v3353 = vpack.c.b16 %v3348, %v3347
    %v3354 = vpack.c.b16 %v3350, %v3349
    %3359 = vst [vmem:[#allocation10] sm:$0xff] %v3351
    %3360 = vst [vmem:[#allocation10 + $0x8] sm:$0xff] %v3352
    %3361 = vst [vmem:[#allocation10 + $0x10] sm:$0xff] %v3353
    %3362 = vst [vmem:[#allocation10 + $0x18] sm:$0xff] %v3354
    %v3363 = vpack.c.bf16 %v3245, %v3241
    %v3364 = vpack.c.bf16 %v3247, %v3243
    %v3365 = vpack.c.bf16 %v3331, %v3327
    %v3366 = vpack.c.bf16 %v3333, %v3329
    %v3371 = vunpack.c.l.b16 %v3363
    %v3372 = vunpack.c.l.b16 %v3364
    %v3373 = vunpack.c.l.b16 %v3365
    %v3374 = vunpack.c.l.b16 %v3366
    %v3375 = vunpack.c.h.b16 %v3363
    %v3376 = vunpack.c.h.b16 %v3364
    %v3377 = vunpack.c.h.b16 %v3365
    %v3378 = vunpack.c.h.b16 %v3366
    %v3379 = vpack.c.b16 %v3372, %v3371
    %v3380 = vpack.c.b16 %v3374, %v3373
    %v3381 = vpack.c.b16 %v3376, %v3375
    %v3382 = vpack.c.b16 %v3378, %v3377
    %3387 = vst [vmem:[#allocation11] sm:$0xff] %v3379
    %3388 = vst [vmem:[#allocation11 + $0x8] sm:$0xff] %v3380
    %3389 = vst [vmem:[#allocation11 + $0x10] sm:$0xff] %v3381
    %3390 = vst [vmem:[#allocation11 + $0x18] sm:$0xff] %v3382
    // Predicated region
    $region54: #{rnd_sm_forward.1} parent=1 // pred_check
      _
    $region55: #{rnd_sm_forward.1} parent=1 // pred_check_branch
      %3392 = sbr.rel (0) target = $region57
    $region56: #{rnd_sm_forward.1} parent=1 // pred_region
      %s3394 = ssub.s32 512, 512
      %3395 = vsyncadd [#allocation4], %s3394
      %s3396 = sshll.u32 [#allocation10], 4
      %s3397 = int_to_ptr.vmem [resolvable:$true] %s3396
      %3402 = dma.vmem_to_hbm [thread:$0]  %s3397, 512, %s9, [#allocation4], 256, 256, 16
    $region57: #{rnd_sm_forward.1} parent=1 // pred_fallthru
      _
    // Predicated region
    $region58: #{rnd_sm_forward.1} parent=1 // pred_check
      _
    $region59: #{rnd_sm_forward.1} parent=1 // pred_check_branch
      %3404 = sbr.rel (0) target = $region61
    $region60: #{rnd_sm_forward.1} parent=1 // pred_region
      %s3406 = ssub.s32 512, 512
      %3407 = vsyncadd [#allocation12], %s3406
      %s3408 = sshll.u32 [#allocation11], 4
      %s3409 = int_to_ptr.vmem [resolvable:$true] %s3408
      %3414 = dma.vmem_to_hbm [thread:$0]  %s3409, 512, %s10, [#allocation12], 256, 256, 16
    $region61: #{rnd_sm_forward.1} parent=1 // pred_fallthru
      _
    // Predicated region
    $region62: #{rnd_sm_forward.1} parent=1 // pred_check
      _
    $region63: #{rnd_sm_forward.1} parent=1 // pred_check_branch
      %3416 = sbr.rel (0) target = $region65
    $region64: #{rnd_sm_forward.1} parent=1 // pred_region
      %3417 = dma.done [#allocation4], 512
    $region65: #{rnd_sm_forward.1} parent=1 // pred_fallthru
      _
    // Predicated region
    $region66: #{rnd_sm_forward.1} parent=1 // pred_check
      _
    $region67: #{rnd_sm_forward.1} parent=1 // pred_check_branch
      %3419 = sbr.rel (0) target = $region69
    $region68: #{rnd_sm_forward.1} parent=1 // pred_region
      %3420 = dma.done [#allocation12], 512
    $region69: #{rnd_sm_forward.1} parent=1 // pred_fallthru
      _
    %3421 = vsyncpa [#allocation3], 1
    %3422 = vsyncpa [#allocation6], 1
    %3423 = vsyncpa [#allocation9], 1
    %3424 = vsyncpa [#allocation4], 1
    %3425 = vsyncpa [#allocation12], 1

</llo_original>
